<compile_context>
chip_gen: v6e
topology: v6e:2x2x1
jax: 0.10.0
libtpu: 0.0.40
codegen_flags: <defaults>
</compile_context>

<pallas_src>
import functools
import math

import jax
import jax.numpy as jnp
from jax.experimental import pallas as pl
from jax.experimental.pallas import tpu as pltpu


# ---------------------------------------------------------------------------
# Fused kernel: QKV projection + attention (softmax over full row, mask=None)
#               + output projection.
#
#   xr_ref : (1, S,  E)  whole batch row (only read when projecting K/V)
#   xq_ref : (1, tq, E)  current q tile
#   wq_ref : (E, E)      Q weights, softmax scale pre-folded
#   bq_ref : (1, E)      Q bias, scale pre-folded (f32)
#   wkv_ref: (E, 2E)     [K | V] weights
#   bkv_ref: (1, 2E)     [K | V] bias (f32)
#   wo_ref : (E, E)      output projection weights
#   bo_ref : (1, E)      output projection bias (f32)
#   o_ref  : (1, tq, E)  lane-dense output tile
#   k_sc, v_sc : VMEM (S, E) compute_dtype  -- per-row K/V, persist across q tiles
#   heads_sc   : VMEM (tq, E) compute_dtype -- normalized heads staging buffer
# ---------------------------------------------------------------------------
def _fused_mha_kernel(xr_ref, xq_ref, wq_ref, bq_ref, wkv_ref, bkv_ref,
                      wo_ref, bo_ref, o_ref, k_sc, v_sc, heads_sc, *,
                      num_heads, head_dim, compute_dtype, approx_recip):
    qi = pl.program_id(1)
    H, D = num_heads, head_dim
    E = H * D

    # --- project K and V for the whole row once per batch element ------------
    @pl.when(qi == 0)
    def _project_kv():
        x_row = xr_ref[0]                                            # [S, E]
        kv = jnp.dot(x_row, wkv_ref[...],
                     preferred_element_type=jnp.float32) + bkv_ref[...]   # [S, 2E] f32
        k_sc[...] = kv[:, :E].astype(compute_dtype)
        v_sc[...] = kv[:, E:].astype(compute_dtype)

    # --- project Q for this tile (softmax scale already folded into wq/bq) ---
    q = (jnp.dot(xq_ref[0], wq_ref[...], preferred_element_type=jnp.float32)
         + bq_ref[...]).astype(compute_dtype)                        # [tq, E]

    # --- per-head attention against VMEM-resident K/V ------------------------
    for h in range(H):                                               # static unroll
        qh = q[:, h * D:(h + 1) * D]                                 # [tq, D]
        kh = k_sc[:, h * D:(h + 1) * D]                              # [S,  D]
        vh = v_sc[:, h * D:(h + 1) * D]                              # [S,  D]

        # scores = qh @ kh^T without materializing kh^T (contract last dims)
        s = jax.lax.dot_general(
            qh, kh, dimension_numbers=(((1,), (1,)), ((), ())),
            preferred_element_type=jnp.float32)                      # [tq, S] f32

        m = jnp.max(s, axis=-1, keepdims=True)                       # f32 softmax
        p = jnp.exp(s - m)                                           # [tq, S] f32
        l = jnp.sum(p, axis=-1, keepdims=True)                       # [tq, 1]
        inv_l = pl.reciprocal(l, approx=approx_recip)                # EUP
        head = jnp.dot(p.astype(compute_dtype), vh,
                       preferred_element_type=jnp.float32) * inv_l   # [tq, D] f32
        heads_sc[:, h * D:(h + 1) * D] = head.astype(compute_dtype)

    # --- fused output projection: one K=E MXU matmul --------------------------
    out = jnp.dot(heads_sc[...], wo_ref[...],
                  preferred_element_type=jnp.float32) + bo_ref[...]  # [tq, E] f32
    o_ref[0] = out.astype(o_ref.dtype)


def _pick_tile(dim, preferred, align):
    """Largest tile <= preferred that divides dim and is a multiple of `align`."""
    if dim <= preferred:
        return dim
    for t in range(preferred, align - 1, -1):
        if dim % t == 0 and t % align == 0:
            return t
    return dim


def multi_attention(hidden_state, params, *, compute_dtype=jnp.bfloat16,
                    out_dtype=jnp.float32, q_block=256):
    """hidden_state: [B, S, E] float32.  params: dict of weights (see init_params)."""
    B, S, E = hidden_state.shape
    wq, wk, wv = params["wq"], params["wk"], params["wv"]    # [H, E, D]
    bq, bk, bv = params["bq"], params["bk"], params["bv"]    # [H, 1, D]
    wo, bo = params["wo"], params["bo"]                      # [E, E], [1, E]
    H, _, D = wq.shape
    assert H * D == E
    scale = 1.0 / math.sqrt(D)

    # --- one-time weight re-layouts (plain XLA, outside the kernel) ----------
    def heads_to_cols(w):                                    # [H,E,D] -> [E, H*D]
        return jnp.transpose(w, (1, 0, 2)).reshape(E, E)

    w_q = (heads_to_cols(wq) * scale).astype(compute_dtype)          # scale folded
    b_q = (bq.reshape(1, E) * scale).astype(jnp.float32)
    w_kv = jnp.concatenate([heads_to_cols(wk), heads_to_cols(wv)],
                           axis=1).astype(compute_dtype)             # [E, 2E]
    b_kv = jnp.concatenate([bk.reshape(1, E), bv.reshape(1, E)],
                           axis=1).astype(jnp.float32)               # [1, 2E]
    w_o = wo.astype(compute_dtype)                                   # [E, E]
    b_o = bo.reshape(1, E).astype(jnp.float32)

    # sublane packing: bf16 tiles want multiples of 16 rows, f32 of 8
    align = 8 * (4 // jnp.dtype(compute_dtype).itemsize)
    tq = _pick_tile(S, q_block, align)

    # Raise scoped VMEM above the default, with headroom that stays valid on
    # v5e/v6e (128 MiB physical) and v7x (64 MiB per TensorCore).
    try:
        phys = int(pltpu.get_tpu_info().vmem_capacity_bytes)
    except Exception:
        phys = 64 * 1024 * 1024
    vmem_limit = max(32 * 1024 * 1024,
                     min(phys - 20 * 1024 * 1024, 100 * 1024 * 1024))

    x_c = hidden_state.astype(compute_dtype)   # halve x DMA on the bf16 path

    out = pl.pallas_call(
        functools.partial(_fused_mha_kernel, num_heads=H, head_dim=D,
                          compute_dtype=compute_dtype,
                          approx_recip=(compute_dtype is not jnp.float32)),
        out_shape=jax.ShapeDtypeStruct((B, S, E), out_dtype),
        grid_spec=pltpu.PrefetchScalarGridSpec(
            num_scalar_prefetch=0,
            grid=(B, S // tq),
            in_specs=[
                pl.BlockSpec((1, S, E), lambda b, qi: (b, 0, 0)),     # x (whole row, K/V proj)
                pl.BlockSpec((1, tq, E), lambda b, qi: (b, qi, 0)),   # x (q tile)
                pl.BlockSpec((E, E), lambda b, qi: (0, 0)),           # Wq (scaled)
                pl.BlockSpec((1, E), lambda b, qi: (0, 0)),           # bq (scaled)
                pl.BlockSpec((E, 2 * E), lambda b, qi: (0, 0)),       # Wkv
                pl.BlockSpec((1, 2 * E), lambda b, qi: (0, 0)),       # bkv
                pl.BlockSpec((E, E), lambda b, qi: (0, 0)),           # Wo
                pl.BlockSpec((1, E), lambda b, qi: (0, 0)),           # bo
            ],
            out_specs=pl.BlockSpec((1, tq, E), lambda b, qi: (b, qi, 0)),
            scratch_shapes=[
                pltpu.VMEM((S, E), compute_dtype),    # K, whole row
                pltpu.VMEM((S, E), compute_dtype),    # V, whole row
                pltpu.VMEM((tq, E), compute_dtype),   # normalized heads staging
            ],
        ),
        # q-tile axis is "arbitrary": K/V scratch is produced at qi==0 and reused
        # by later q tiles of the same batch row.  Megacore parallelism over B.
        compiler_params=pltpu.CompilerParams(
            dimension_semantics=("parallel", "arbitrary"),
            vmem_limit_bytes=vmem_limit),
    )(x_c, x_c, w_q, b_q, w_kv, b_kv, w_o, b_o)

    return out


def init_params(key, embed_dim, num_heads):
    head_dim = embed_dim // num_heads
    keys = jax.random.split(key, 8)
    scale = 0.02
    return {
        "wq": scale * jax.random.normal(keys[0], (num_heads, embed_dim, head_dim), jnp.float32),
        "wk": scale * jax.random.normal(keys[1], (num_heads, embed_dim, head_dim), jnp.float32),
        "wv": scale * jax.random.normal(keys[2], (num_heads, embed_dim, head_dim), jnp.float32),
        "bq": scale * jax.random.normal(keys[3], (num_heads, 1, head_dim), jnp.float32),
        "bk": scale * jax.random.normal(keys[4], (num_heads, 1, head_dim), jnp.float32),
        "bv": scale * jax.random.normal(keys[5], (num_heads, 1, head_dim), jnp.float32),
        "wo": scale * jax.random.normal(keys[6], (embed_dim, embed_dim), jnp.float32),
        "bo": scale * jax.random.normal(keys[7], (1, embed_dim), jnp.float32),
    }


def _reference(hidden_state, params):
    """Plain-JAX reference reproducing the PyTorch forward (mask is None)."""
    H, _, D = params["wq"].shape
    outs = []
    for h in range(H):
        q = hidden_state @ params["wq"][h] + params["bq"][h]
        k = hidden_state @ params["wk"][h] + params["bk"][h]
        v = hidden_state @ params["wv"][h] + params["bv"][h]
        scores = jnp.einsum("bqd,bkd->bqk", q, k) / math.sqrt(D)
        w = jax.nn.softmax(scores, axis=-1)
        outs.append(jnp.einsum("bqk,bkd->bqd", w, v))
    x = jnp.concatenate(outs, axis=-1)
    return x @ params["wo"] + params["bo"]


if __name__ == "__main__":
    # small shapes consistent with the module: batch=2, seq=8, hidden=32, heads=4
    B, S, E, H = 2, 8, 32, 4
    key = jax.random.PRNGKey(0)
    k_x, k_p = jax.random.split(key)
    x = jax.random.normal(k_x, (B, S, E), jnp.float32)
    params = init_params(k_p, E, H)

    ref = _reference(x, params)

    # exact path (f32 MXU operands) -- tight numerical check of the structure
    out_f32 = jax.block_until_ready(multi_attention(x, params, compute_dtype=jnp.float32))
    assert out_f32.shape == (B, S, E)
    assert jnp.allclose(out_f32, ref, atol=1e-4, rtol=1e-4), "f32 path mismatch vs reference"

    # default fast path (bf16 MXU operands, f32 accumulation / softmax math)
    out_bf16 = jax.block_until_ready(multi_attention(x, params, compute_dtype=jnp.bfloat16))
    assert out_bf16.shape == (B, S, E)
    assert jnp.allclose(out_bf16, ref, atol=2e-2, rtol=2e-2), "bf16 path mismatch vs reference"

    print("KERNEL_OK")
</pallas_src>

<mosaic_0001>
module attributes {stable_mosaic.version = 11 : i64} {
  func.func @_fused_mha_kernel(%arg0: i32, %arg1: i32, %arg2: memref<1x8x32xf32, #tpu.memory_space<vmem>>, %arg3: memref<1x8x32xf32, #tpu.memory_space<vmem>>, %arg4: memref<32x32xf32, #tpu.memory_space<vmem>>, %arg5: memref<1x32xf32, #tpu.memory_space<vmem>>, %arg6: memref<32x64xf32, #tpu.memory_space<vmem>>, %arg7: memref<1x64xf32, #tpu.memory_space<vmem>>, %arg8: memref<32x32xf32, #tpu.memory_space<vmem>>, %arg9: memref<1x32xf32, #tpu.memory_space<vmem>>, %arg10: memref<1x8x32xf32, #tpu.memory_space<vmem>>, %arg11: memref<8x32xf32, #tpu.memory_space<vmem>>, %arg12: memref<8x32xf32, #tpu.memory_space<vmem>>, %arg13: memref<8x32xf32, #tpu.memory_space<vmem>>) attributes {dimension_semantics = [#tpu.dimension_semantics<parallel>, #tpu.dimension_semantics<arbitrary>], iteration_bounds = array<i64: 2, 1>, scalar_prefetch = 0 : i64, scratch_operands = 3 : i64, tpu.core_type = #tpu.core_type<tc>, window_params = [{transform_indices = @transform_0, window_bounds = array<i64: 1, 8, 32>}, {transform_indices = @transform_1, window_bounds = array<i64: 1, 8, 32>}, {pipeline_mode = #tpu.pipeline_mode<synchronous>, transform_indices = @transform_2, window_bounds = array<i64: 32, 32>}, {pipeline_mode = #tpu.pipeline_mode<synchronous>, transform_indices = @transform_3, window_bounds = array<i64: 1, 32>}, {pipeline_mode = #tpu.pipeline_mode<synchronous>, transform_indices = @transform_4, window_bounds = array<i64: 32, 64>}, {pipeline_mode = #tpu.pipeline_mode<synchronous>, transform_indices = @transform_5, window_bounds = array<i64: 1, 64>}, {pipeline_mode = #tpu.pipeline_mode<synchronous>, transform_indices = @transform_6, window_bounds = array<i64: 32, 32>}, {pipeline_mode = #tpu.pipeline_mode<synchronous>, transform_indices = @transform_7, window_bounds = array<i64: 1, 32>}, {transform_indices = @transform_8, window_bounds = array<i64: 1, 8, 32>}]} {
    %c0_i32 = arith.constant 0 : i32
    %0 = arith.cmpi eq, %arg1, %c0_i32 : i32
    %1 = arith.extui %0 : i1 to i32
    %c0_i32_0 = arith.constant 0 : i32
    %2 = arith.cmpi ne, %1, %c0_i32_0 : i32
    scf.if %2 {
      %c0_54 = arith.constant 0 : index
      %c0_55 = arith.constant 0 : index
      %c0_56 = arith.constant 0 : index
      %83 = vector.load %arg2[%c0_54, %c0_55, %c0_56] : memref<1x8x32xf32, #tpu.memory_space<vmem>>, vector<1x8x32xf32>
      %84 = vector.shape_cast %83 : vector<1x8x32xf32> to vector<8x32xf32>
      %c0_57 = arith.constant 0 : index
      %c0_58 = arith.constant 0 : index
      %85 = vector.load %arg6[%c0_57, %c0_58] : memref<32x64xf32, #tpu.memory_space<vmem>>, vector<32x64xf32>
      %cst_59 = arith.constant dense<0.000000e+00> : vector<8x64xf32>
      %86 = tpu.matmul %84, %85, %cst_59 {dimension_numbers = #tpu.dot_dimension_numbers<[1], [0], [0], [1], [0, 0, 1, 1], [], []>} : vector<8x32xf32>, vector<32x64xf32>, vector<8x64xf32> -> vector<8x64xf32>
      %c0_60 = arith.constant 0 : index
      %c0_61 = arith.constant 0 : index
      %87 = vector.load %arg7[%c0_60, %c0_61] : memref<1x64xf32, #tpu.memory_space<vmem>>, vector<1x64xf32>
      %88 = vector.broadcast %87 : vector<1x64xf32> to vector<8x64xf32>
      %89 = arith.addf %86, %88 : vector<8x64xf32>
      %90 = vector.extract_strided_slice %89 {offsets = [0, 0], sizes = [8, 32], strides = [1, 1]} : vector<8x64xf32> to vector<8x32xf32>
      %c0_62 = arith.constant 0 : index
      %c0_63 = arith.constant 0 : index
      %91 = vector.load %arg11[%c0_62, %c0_63] : memref<8x32xf32, #tpu.memory_space<vmem>>, vector<8x32xf32>
      tpu.vector_store %arg11[%c0_62, %c0_63], %90 {strides = array<i32>} : memref<8x32xf32, #tpu.memory_space<vmem>>, vector<8x32xf32>,
      %92 = vector.extract_strided_slice %89 {offsets = [0, 32], sizes = [8, 32], strides = [1, 1]} : vector<8x64xf32> to vector<8x32xf32>
      %c0_64 = arith.constant 0 : index
      %c0_65 = arith.constant 0 : index
      %93 = vector.load %arg12[%c0_64, %c0_65] : memref<8x32xf32, #tpu.memory_space<vmem>>, vector<8x32xf32>
      tpu.vector_store %arg12[%c0_64, %c0_65], %92 {strides = array<i32>} : memref<8x32xf32, #tpu.memory_space<vmem>>, vector<8x32xf32>,
    } else {
    }
    %c0 = arith.constant 0 : index
    %c0_1 = arith.constant 0 : index
    %c0_2 = arith.constant 0 : index
    %3 = vector.load %arg3[%c0, %c0_1, %c0_2] : memref<1x8x32xf32, #tpu.memory_space<vmem>>, vector<1x8x32xf32>
    %4 = vector.shape_cast %3 : vector<1x8x32xf32> to vector<8x32xf32>
    %c0_3 = arith.constant 0 : index
    %c0_4 = arith.constant 0 : index
    %5 = vector.load %arg4[%c0_3, %c0_4] : memref<32x32xf32, #tpu.memory_space<vmem>>, vector<32x32xf32>
    %cst = arith.constant dense<0.000000e+00> : vector<8x32xf32>
    %6 = tpu.matmul %4, %5, %cst {dimension_numbers = #tpu.dot_dimension_numbers<[1], [0], [0], [1], [0, 0, 1, 1], [], []>} : vector<8x32xf32>, vector<32x32xf32>, vector<8x32xf32> -> vector<8x32xf32>
    %c0_5 = arith.constant 0 : index
    %c0_6 = arith.constant 0 : index
    %7 = vector.load %arg5[%c0_5, %c0_6] : memref<1x32xf32, #tpu.memory_space<vmem>>, vector<1x32xf32>
    %8 = vector.broadcast %7 : vector<1x32xf32> to vector<8x32xf32>
    %9 = arith.addf %6, %8 : vector<8x32xf32>
    %10 = vector.extract_strided_slice %9 {offsets = [0, 0], sizes = [8, 8], strides = [1, 1]} : vector<8x32xf32> to vector<8x8xf32>
    %c0_7 = arith.constant 0 : index
    %c0_8 = arith.constant 0 : index
    %11 = vector.load %arg11[%c0_7, %c0_8] : memref<8x32xf32, #tpu.memory_space<vmem>>, vector<8x8xf32>
    %c0_9 = arith.constant 0 : index
    %c0_10 = arith.constant 0 : index
    %12 = vector.load %arg12[%c0_9, %c0_10] : memref<8x32xf32, #tpu.memory_space<vmem>>, vector<8x8xf32>
    %cst_11 = arith.constant dense<0.000000e+00> : vector<8x8xf32>
    %13 = tpu.matmul %10, %11, %cst_11 {dimension_numbers = #tpu.dot_dimension_numbers<[1], [1], [0], [0], [0, 0, 1, 0], [], []>} : vector<8x8xf32>, vector<8x8xf32>, vector<8x8xf32> -> vector<8x8xf32>
    %cst_12 = arith.constant dense<0xFF800000> : vector<8xf32>
    %14 = vector.multi_reduction <maximumf>, %13, %cst_12 [1] : vector<8x8xf32> to vector<8xf32>
    %15 = vector.shape_cast %14 : vector<8xf32> to vector<8x1xf32>
    %16 = vector.broadcast %15 : vector<8x1xf32> to vector<8x8xf32>
    %17 = arith.subf %13, %16 : vector<8x8xf32>
    %18 = math.exp %17 : vector<8x8xf32>
    %cst_13 = arith.constant dense<0.000000e+00> : vector<8xf32>
    %19 = vector.multi_reduction <add>, %18, %cst_13 [1] : vector<8x8xf32> to vector<8xf32>
    %20 = vector.shape_cast %19 : vector<8xf32> to vector<8x1xf32>
    %21 = tpu.reciprocal %20 : vector<8x1xf32> -> vector<8x1xf32>
    %cst_14 = arith.constant dense<0.000000e+00> : vector<8x8xf32>
    %22 = tpu.matmul %18, %12, %cst_14 {dimension_numbers = #tpu.dot_dimension_numbers<[1], [0], [0], [1], [0, 0, 1, 1], [], []>} : vector<8x8xf32>, vector<8x8xf32>, vector<8x8xf32> -> vector<8x8xf32>
    %23 = vector.broadcast %21 : vector<8x1xf32> to vector<8x8xf32>
    %24 = arith.mulf %22, %23 : vector<8x8xf32>
    %c0_15 = arith.constant 0 : index
    %c0_16 = arith.constant 0 : index
    %25 = vector.load %arg13[%c0_15, %c0_16] : memref<8x32xf32, #tpu.memory_space<vmem>>, vector<8x8xf32>
    tpu.vector_store %arg13[%c0_15, %c0_16], %24 {strides = array<i32>} : memref<8x32xf32, #tpu.memory_space<vmem>>, vector<8x8xf32>,
    %26 = vector.extract_strided_slice %9 {offsets = [0, 8], sizes = [8, 8], strides = [1, 1]} : vector<8x32xf32> to vector<8x8xf32>
    %c0_17 = arith.constant 0 : index
    %c8 = arith.constant 8 : index
    %27 = vector.load %arg11[%c0_17, %c8] : memref<8x32xf32, #tpu.memory_space<vmem>>, vector<8x8xf32>
    %c0_18 = arith.constant 0 : index
    %c8_19 = arith.constant 8 : index
    %28 = vector.load %arg12[%c0_18, %c8_19] : memref<8x32xf32, #tpu.memory_space<vmem>>, vector<8x8xf32>
    %cst_20 = arith.constant dense<0.000000e+00> : vector<8x8xf32>
    %29 = tpu.matmul %26, %27, %cst_20 {dimension_numbers = #tpu.dot_dimension_numbers<[1], [1], [0], [0], [0, 0, 1, 0], [], []>} : vector<8x8xf32>, vector<8x8xf32>, vector<8x8xf32> -> vector<8x8xf32>
    %cst_21 = arith.constant dense<0xFF800000> : vector<8xf32>
    %30 = vector.multi_reduction <maximumf>, %29, %cst_21 [1] : vector<8x8xf32> to vector<8xf32>
    %31 = vector.shape_cast %30 : vector<8xf32> to vector<8x1xf32>
    %32 = vector.broadcast %31 : vector<8x1xf32> to vector<8x8xf32>
    %33 = arith.subf %29, %32 : vector<8x8xf32>
    %34 = math.exp %33 : vector<8x8xf32>
    %cst_22 = arith.constant dense<0.000000e+00> : vector<8xf32>
    %35 = vector.multi_reduction <add>, %34, %cst_22 [1] : vector<8x8xf32> to vector<8xf32>
    %36 = vector.shape_cast %35 : vector<8xf32> to vector<8x1xf32>
    %37 = tpu.reciprocal %36 : vector<8x1xf32> -> vector<8x1xf32>
    %cst_23 = arith.constant dense<0.000000e+00> : vector<8x8xf32>
    %38 = tpu.matmul %34, %28, %cst_23 {dimension_numbers = #tpu.dot_dimension_numbers<[1], [0], [0], [1], [0, 0, 1, 1], [], []>} : vector<8x8xf32>, vector<8x8xf32>, vector<8x8xf32> -> vector<8x8xf32>
    %39 = vector.broadcast %37 : vector<8x1xf32> to vector<8x8xf32>
    %40 = arith.mulf %38, %39 : vector<8x8xf32>
    %c0_24 = arith.constant 0 : index
    %c8_25 = arith.constant 8 : index
    %41 = vector.load %arg13[%c0_24, %c8_25] : memref<8x32xf32, #tpu.memory_space<vmem>>, vector<8x8xf32>
    tpu.vector_store %arg13[%c0_24, %c8_25], %40 {strides = array<i32>} : memref<8x32xf32, #tpu.memory_space<vmem>>, vector<8x8xf32>,
    %42 = vector.extract_strided_slice %9 {offsets = [0, 16], sizes = [8, 8], strides = [1, 1]} : vector<8x32xf32> to vector<8x8xf32>
    %c0_26 = arith.constant 0 : index
    %c16 = arith.constant 16 : index
    %43 = vector.load %arg11[%c0_26, %c16] : memref<8x32xf32, #tpu.memory_space<vmem>>, vector<8x8xf32>
    %c0_27 = arith.constant 0 : index
    %c16_28 = arith.constant 16 : index
    %44 = vector.load %arg12[%c0_27, %c16_28] : memref<8x32xf32, #tpu.memory_space<vmem>>, vector<8x8xf32>
    %cst_29 = arith.constant dense<0.000000e+00> : vector<8x8xf32>
    %45 = tpu.matmul %42, %43, %cst_29 {dimension_numbers = #tpu.dot_dimension_numbers<[1], [1], [0], [0], [0, 0, 1, 0], [], []>} : vector<8x8xf32>, vector<8x8xf32>, vector<8x8xf32> -> vector<8x8xf32>
    %cst_30 = arith.constant dense<0xFF800000> : vector<8xf32>
    %46 = vector.multi_reduction <maximumf>, %45, %cst_30 [1] : vector<8x8xf32> to vector<8xf32>
    %47 = vector.shape_cast %46 : vector<8xf32> to vector<8x1xf32>
    %48 = vector.broadcast %47 : vector<8x1xf32> to vector<8x8xf32>
    %49 = arith.subf %45, %48 : vector<8x8xf32>
    %50 = math.exp %49 : vector<8x8xf32>
    %cst_31 = arith.constant dense<0.000000e+00> : vector<8xf32>
    %51 = vector.multi_reduction <add>, %50, %cst_31 [1] : vector<8x8xf32> to vector<8xf32>
    %52 = vector.shape_cast %51 : vector<8xf32> to vector<8x1xf32>
    %53 = tpu.reciprocal %52 : vector<8x1xf32> -> vector<8x1xf32>
    %cst_32 = arith.constant dense<0.000000e+00> : vector<8x8xf32>
    %54 = tpu.matmul %50, %44, %cst_32 {dimension_numbers = #tpu.dot_dimension_numbers<[1], [0], [0], [1], [0, 0, 1, 1], [], []>} : vector<8x8xf32>, vector<8x8xf32>, vector<8x8xf32> -> vector<8x8xf32>
    %55 = vector.broadcast %53 : vector<8x1xf32> to vector<8x8xf32>
    %56 = arith.mulf %54, %55 : vector<8x8xf32>
    %c0_33 = arith.constant 0 : index
    %c16_34 = arith.constant 16 : index
    %57 = vector.load %arg13[%c0_33, %c16_34] : memref<8x32xf32, #tpu.memory_space<vmem>>, vector<8x8xf32>
    tpu.vector_store %arg13[%c0_33, %c16_34], %56 {strides = array<i32>} : memref<8x32xf32, #tpu.memory_space<vmem>>, vector<8x8xf32>,
    %58 = vector.extract_strided_slice %9 {offsets = [0, 24], sizes = [8, 8], strides = [1, 1]} : vector<8x32xf32> to vector<8x8xf32>
    %c0_35 = arith.constant 0 : index
    %c24 = arith.constant 24 : index
    %59 = vector.load %arg11[%c0_35, %c24] : memref<8x32xf32, #tpu.memory_space<vmem>>, vector<8x8xf32>
    %c0_36 = arith.constant 0 : index
    %c24_37 = arith.constant 24 : index
    %60 = vector.load %arg12[%c0_36, %c24_37] : memref<8x32xf32, #tpu.memory_space<vmem>>, vector<8x8xf32>
    %cst_38 = arith.constant dense<0.000000e+00> : vector<8x8xf32>
    %61 = tpu.matmul %58, %59, %cst_38 {dimension_numbers = #tpu.dot_dimension_numbers<[1], [1], [0], [0], [0, 0, 1, 0], [], []>} : vector<8x8xf32>, vector<8x8xf32>, vector<8x8xf32> -> vector<8x8xf32>
    %cst_39 = arith.constant dense<0xFF800000> : vector<8xf32>
    %62 = vector.multi_reduction <maximumf>, %61, %cst_39 [1] : vector<8x8xf32> to vector<8xf32>
    %63 = vector.shape_cast %62 : vector<8xf32> to vector<8x1xf32>
    %64 = vector.broadcast %63 : vector<8x1xf32> to vector<8x8xf32>
    %65 = arith.subf %61, %64 : vector<8x8xf32>
    %66 = math.exp %65 : vector<8x8xf32>
    %cst_40 = arith.constant dense<0.000000e+00> : vector<8xf32>
    %67 = vector.multi_reduction <add>, %66, %cst_40 [1] : vector<8x8xf32> to vector<8xf32>
    %68 = vector.shape_cast %67 : vector<8xf32> to vector<8x1xf32>
    %69 = tpu.reciprocal %68 : vector<8x1xf32> -> vector<8x1xf32>
    %cst_41 = arith.constant dense<0.000000e+00> : vector<8x8xf32>
    %70 = tpu.matmul %66, %60, %cst_41 {dimension_numbers = #tpu.dot_dimension_numbers<[1], [0], [0], [1], [0, 0, 1, 1], [], []>} : vector<8x8xf32>, vector<8x8xf32>, vector<8x8xf32> -> vector<8x8xf32>
    %71 = vector.broadcast %69 : vector<8x1xf32> to vector<8x8xf32>
    %72 = arith.mulf %70, %71 : vector<8x8xf32>
    %c0_42 = arith.constant 0 : index
    %c24_43 = arith.constant 24 : index
    %73 = vector.load %arg13[%c0_42, %c24_43] : memref<8x32xf32, #tpu.memory_space<vmem>>, vector<8x8xf32>
    tpu.vector_store %arg13[%c0_42, %c24_43], %72 {strides = array<i32>} : memref<8x32xf32, #tpu.memory_space<vmem>>, vector<8x8xf32>,
    %c0_44 = arith.constant 0 : index
    %c0_45 = arith.constant 0 : index
    %74 = vector.load %arg13[%c0_44, %c0_45] : memref<8x32xf32, #tpu.memory_space<vmem>>, vector<8x32xf32>
    %c0_46 = arith.constant 0 : index
    %c0_47 = arith.constant 0 : index
    %75 = vector.load %arg8[%c0_46, %c0_47] : memref<32x32xf32, #tpu.memory_space<vmem>>, vector<32x32xf32>
    %cst_48 = arith.constant dense<0.000000e+00> : vector<8x32xf32>
    %76 = tpu.matmul %74, %75, %cst_48 {dimension_numbers = #tpu.dot_dimension_numbers<[1], [0], [0], [1], [0, 0, 1, 1], [], []>} : vector<8x32xf32>, vector<32x32xf32>, vector<8x32xf32> -> vector<8x32xf32>
    %c0_49 = arith.constant 0 : index
    %c0_50 = arith.constant 0 : index
    %77 = vector.load %arg9[%c0_49, %c0_50] : memref<1x32xf32, #tpu.memory_space<vmem>>, vector<1x32xf32>
    %78 = vector.broadcast %77 : vector<1x32xf32> to vector<8x32xf32>
    %79 = arith.addf %76, %78 : vector<8x32xf32>
    %c0_51 = arith.constant 0 : index
    %c0_52 = arith.constant 0 : index
    %c0_53 = arith.constant 0 : index
    %80 = vector.load %arg10[%c0_51, %c0_52, %c0_53] : memref<1x8x32xf32, #tpu.memory_space<vmem>>, vector<1x8x32xf32>
    %81 = vector.shape_cast %80 : vector<1x8x32xf32> to vector<8x32xf32>
    %82 = vector.shape_cast %79 : vector<8x32xf32> to vector<1x8x32xf32>
    tpu.vector_store %arg10[%c0_51, %c0_52, %c0_53], %82 {strides = array<i32>} : memref<1x8x32xf32, #tpu.memory_space<vmem>>, vector<1x8x32xf32>,
    return
  }
  func.func @transform_0(%arg0: i32, %arg1: i32) -> (i32, i32, i32) {
    %c0_i32 = arith.constant 0 : i32
    %c0_i32_0 = arith.constant 0 : i32
    %c0_i32_1 = arith.constant 0 : i32
    return %arg0, %c0_i32, %c0_i32_0 : i32, i32, i32
  }
  func.func @transform_1(%arg0: i32, %arg1: i32) -> (i32, i32, i32) {
    %c0_i32 = arith.constant 0 : i32
    %c0_i32_0 = arith.constant 0 : i32
    return %arg0, %arg1, %c0_i32 : i32, i32, i32
  }
  func.func @transform_2(%arg0: i32, %arg1: i32) -> (i32, i32) {
    %c0_i32 = arith.constant 0 : i32
    %c0_i32_0 = arith.constant 0 : i32
    %c0_i32_1 = arith.constant 0 : i32
    return %c0_i32, %c0_i32_0 : i32, i32
  }
  func.func @transform_3(%arg0: i32, %arg1: i32) -> (i32, i32) {
    %c0_i32 = arith.constant 0 : i32
    %c0_i32_0 = arith.constant 0 : i32
    %c0_i32_1 = arith.constant 0 : i32
    return %c0_i32, %c0_i32_0 : i32, i32
  }
  func.func @transform_4(%arg0: i32, %arg1: i32) -> (i32, i32) {
    %c0_i32 = arith.constant 0 : i32
    %c0_i32_0 = arith.constant 0 : i32
    %c0_i32_1 = arith.constant 0 : i32
    return %c0_i32, %c0_i32_0 : i32, i32
  }
  func.func @transform_5(%arg0: i32, %arg1: i32) -> (i32, i32) {
    %c0_i32 = arith.constant 0 : i32
    %c0_i32_0 = arith.constant 0 : i32
    %c0_i32_1 = arith.constant 0 : i32
    return %c0_i32, %c0_i32_0 : i32, i32
  }
  func.func @transform_6(%arg0: i32, %arg1: i32) -> (i32, i32) {
    %c0_i32 = arith.constant 0 : i32
    %c0_i32_0 = arith.constant 0 : i32
    %c0_i32_1 = arith.constant 0 : i32
    return %c0_i32, %c0_i32_0 : i32, i32
  }
  func.func @transform_7(%arg0: i32, %arg1: i32) -> (i32, i32) {
    %c0_i32 = arith.constant 0 : i32
    %c0_i32_0 = arith.constant 0 : i32
    %c0_i32_1 = arith.constant 0 : i32
    return %c0_i32, %c0_i32_0 : i32, i32
  }
  func.func @transform_8(%arg0: i32, %arg1: i32) -> (i32, i32, i32) {
    %c0_i32 = arith.constant 0 : i32
    %c0_i32_0 = arith.constant 0 : i32
    return %arg0, %arg1, %c0_i32 : i32, i32, i32
  }
}

</mosaic_0001>

<llo_original>
// kernel: tpu_custom_call.1
$region0: #{tpu_custom_call.1}
  #allocation0 [shape = 'u32[]', space=smem, size = 0x4, offset = 0x4, fixed_abs, tag = 'smem constant byte address 0x4 - core index']
  #allocation1 [shape = 'u32[144,128]{1,0:T(1,128)}', space=vmem, size = 0x12000, scoped, tag = 'internal scratch']
  #allocation2 [shape = 'f32[8,32]{1,0:T(8,128)}', space=vmem, size = 0x1000, scoped, tag = 'scratch operand']
  #allocation3 [shape = 'f32[8,32]{1,0:T(8,128)}', space=vmem, size = 0x1000, scoped, tag = 'scratch operand']
  #allocation4 [shape = 'f32[8,32]{1,0:T(8,128)}', space=vmem, size = 0x1000, scoped, tag = 'scratch operand']
  %s0 = inlined_call_operand.hbm [shape: f32[2,8,32], index: 0, kind: input, shape index: {}]
  %s1 = inlined_call_operand.hbm [shape: f32[2,8,32], index: 1, kind: input, shape index: {}]
  %s2 = inlined_call_operand.hbm [shape: f32[32,32], index: 2, kind: input, shape index: {}]
  %s3 = inlined_call_operand.vmem [shape: f32[1,32], index: 3, kind: input, shape index: {}]
  %s4 = inlined_call_operand.hbm [shape: f32[32,64], index: 4, kind: input, shape index: {}]
  %s5 = inlined_call_operand.vmem [shape: f32[1,64], index: 5, kind: input, shape index: {}]
  %s6 = inlined_call_operand.hbm [shape: f32[32,32], index: 6, kind: input, shape index: {}]
  %s7 = inlined_call_operand.vmem [shape: f32[1,32], index: 7, kind: input, shape index: {}]
  %s8 = inlined_call_operand.hbm [shape: f32[2,8,32], index: 8, kind: output, shape index: {}]
  %s9 = sld [smem:[#allocation0]]
  $region89: #{tpu_custom_call.1} parent=0
    _
  %s11 = ssub.s32 1, %s9
  %s12 = scalar_select 0, %s11, %s9
  $region1: #{tpu_custom_call.1} parent=0
    #allocation5 [shape = 'u8[8192]{0}', space=vmem, size = 0x2000, scoped, tag = 'input window, operand 0']
    #allocation6 [shape = 's32[2]{0}', space=sflag, size = 0x8, scoped, tag = 'scoped memory for tpu_custom_call.1']
    #allocation7 [shape = 's32[2]{0}', space=sflag, size = 0x8, scoped, tag = 'scoped memory for tpu_custom_call.1']
    #allocation8 [shape = 'u8[8192]{0}', space=vmem, size = 0x2000, scoped, tag = 'input window, operand 1']
    #allocation9 [shape = 's32[2]{0}', space=sflag, size = 0x8, scoped, tag = 'scoped memory for tpu_custom_call.1']
    #allocation10 [shape = 'u8[16384]{0}', space=vmem, size = 0x4000, scoped, tag = 'input window, operand 2, single buffered']
    #allocation11 [shape = 'u8[16384]{0}', space=vmem, size = 0x4000, scoped, tag = 'input window, operand 4, single buffered']
    #allocation12 [shape = 's32[1]{0}', space=sflag, size = 0x4, scoped, tag = 'scoped memory for tpu_custom_call.1']
    #allocation13 [shape = 'u8[16384]{0}', space=vmem, size = 0x4000, scoped, tag = 'input window, operand 6, single buffered']
    #allocation14 [shape = 'u8[8192]{0}', space=vmem, size = 0x2000, scoped, tag = 'output window, operand 0']
    %13 = vsyncpa [#allocation6], 0
    %s14 = scalar_lea.sflag [#allocation6], 1
    %15 = vsyncpa %s14, 0
    %16 = vsyncpa [#allocation9], 0
    %s17 = scalar_lea.sflag [#allocation9], 1
    %18 = vsyncpa %s17, 0
    %19 = vsyncpa [#allocation12], 0
    %20 = vsyncpa [#allocation7], 0
    %s21 = scalar_lea.sflag [#allocation7], 1
    %22 = vsyncpa %s21, 0
    loop: start=0, step=1, limit=4
    $region2: #{tpu_custom_call.1} parent=1 // loop_pre_header
      _
    $region3: #{tpu_custom_call.1} parent=1 // loop_header
      %s24 = sphi 0, %s28
      %p25 = scmp.ge.s32.totalorder %s24, 4
      %s31 = sphi 0, %s43
      %s32 = sphi 0, %s39
      %s33 = sphi 0, %s31
      %s34 = sphi 0, %s32
      %s35 = sphi 0, %s33
      %s36 = sphi 0, %s34
      %s46 = sphi 0, %s48
      %s49 = sphi 0, %s46
      %s50 = sphi 0, %s49
      %s66 = sphi 0, %s50
      %s74 = sphi 0, %s76
      %s77 = sphi 0, %s74
      %s78 = sphi 0, %s77
      %s94 = sphi 0, %s78
      %s98 = sphi 0, %s98
      %s100 = sphi 0, %s98
      %s101 = sphi 0, %s100
      %s115 = sphi 0, %s101
      %s119 = sphi 0, %s119
      %s121 = sphi 0, %s119
      %s122 = sphi 0, %s121
      %s136 = sphi 0, %s122
      %s140 = sphi 0, %s140
      %s142 = sphi 0, %s140
      %s143 = sphi 0, %s142
      %s157 = sphi 0, %s143
      %s161 = sphi 0, %s161
      %s163 = sphi 0, %s161
      %s164 = sphi 0, %s163
      %s178 = sphi 0, %s164
      %s182 = sphi 0, %s182
      %s184 = sphi 0, %s182
      %s185 = sphi 0, %s184
      %s199 = sphi 0, %s185
      %s203 = sphi 0, %s203
      %s205 = sphi 0, %s203
      %s206 = sphi 0, %s205
      %s220 = sphi 0, %s206
      %s228 = sphi 0, %s230
      %s231 = sphi 0, %s228
      %s232 = sphi 0, %s231
      %s248 = sphi 0, %s232
    $region4: #{tpu_custom_call.1} parent=1 // loop_header_branch
      %27 = sbr.rel (%p25) target = $region8
    $region5: #{tpu_custom_call.1} parent=1 // loop_body
      %s29 = ssub.s32 %s24, 1
      %s30 = ssub.s32 %s24, 2
      %s37 = sadd.s32 1, %s32
      %p38 = scmp.ge.s32.totalorder %s37, 1
      %s39 = scalar_select %p38, 0, %s37
      %s40 = sadd.s32 1, %s31
      %s41 = scalar_select %p38, %s40, %s31
      %p42 = scmp.ge.s32.totalorder %s41, 2
      %s43 = scalar_select %p42, 0, %s41
      %s44 = ssub.s32 %s31, %s43
      %p45 = scmp.eq.s32.totalorder %s44, 0
      %s47 = sadd.s32 %s46, 1
      %s48 = scalar_select %p45, %s46, %s47
      %p51 = pneg %p45
      %p52 = scmp.eq.s32.totalorder %s24, 1
      %p53 = por %p51, %p52
      %p54 = scmp.ne.s32.totalorder %s46, %s49
      %p55 = scmp.eq.s32.totalorder %s24, 0
      %p56 = por %p54, %p55
      %p57 = scmp.ne.s32.totalorder %s46, %s49
      %p58 = scmp.eq.s32.totalorder %s29, 1
      %p59 = por %p57, %p58
      %p60 = scmp.ne.s32.totalorder %s49, %s50
      %p61 = scmp.eq.s32.totalorder %s29, 0
      %p62 = por %p60, %p61
      %p63 = scmp.ne.s32.totalorder %s49, %s50
      %p64 = scmp.eq.s32.totalorder %s30, 1
      %p65 = por %p63, %p64
      %p67 = scmp.ne.s32.totalorder %s50, %s66
      %p68 = scmp.eq.s32.totalorder %s30, 0
      %p69 = por %p67, %p68
      %s70 = ssub.s32 %s31, %s43
      %s71 = ssub.s32 %s32, %s39
      %s72 = sor.u32 %s70, %s71
      %p73 = scmp.eq.s32.totalorder %s72, 0
      %s75 = sadd.s32 %s74, 1
      %s76 = scalar_select %p73, %s74, %s75
      %p79 = pneg %p73
      %p80 = scmp.eq.s32.totalorder %s24, 1
      %p81 = por %p79, %p80
      %p82 = scmp.ne.s32.totalorder %s74, %s77
      %p83 = scmp.eq.s32.totalorder %s24, 0
      %p84 = por %p82, %p83
      %p85 = scmp.ne.s32.totalorder %s74, %s77
      %p86 = scmp.eq.s32.totalorder %s29, 1
      %p87 = por %p85, %p86
      %p88 = scmp.ne.s32.totalorder %s77, %s78
      %p89 = scmp.eq.s32.totalorder %s29, 0
      %p90 = por %p88, %p89
      %p91 = scmp.ne.s32.totalorder %s77, %s78
      %p92 = scmp.eq.s32.totalorder %s30, 1
      %p93 = por %p91, %p92
      %p95 = scmp.ne.s32.totalorder %s78, %s94
      %p96 = scmp.eq.s32.totalorder %s30, 0
      %p97 = por %p95, %p96
      %s99 = sadd.s32 %s98, 1
      %p102 = scmp.eq.s32.totalorder %s24, 1
      %p103 = scmp.ne.s32.totalorder %s98, %s100
      %p104 = scmp.eq.s32.totalorder %s24, 0
      %p105 = por %p103, %p104
      %p106 = scmp.ne.s32.totalorder %s98, %s100
      %p107 = scmp.eq.s32.totalorder %s29, 1
      %p108 = por %p106, %p107
      %p109 = scmp.ne.s32.totalorder %s100, %s101
      %p110 = scmp.eq.s32.totalorder %s29, 0
      %p111 = por %p109, %p110
      %p112 = scmp.ne.s32.totalorder %s100, %s101
      %p113 = scmp.eq.s32.totalorder %s30, 1
      %p114 = por %p112, %p113
      %p116 = scmp.ne.s32.totalorder %s101, %s115
      %p117 = scmp.eq.s32.totalorder %s30, 0
      %p118 = por %p116, %p117
      %s120 = sadd.s32 %s119, 1
      %p123 = scmp.eq.s32.totalorder %s24, 1
      %p124 = scmp.ne.s32.totalorder %s119, %s121
      %p125 = scmp.eq.s32.totalorder %s24, 0
      %p126 = por %p124, %p125
      %p127 = scmp.ne.s32.totalorder %s119, %s121
      %p128 = scmp.eq.s32.totalorder %s29, 1
      %p129 = por %p127, %p128
      %p130 = scmp.ne.s32.totalorder %s121, %s122
      %p131 = scmp.eq.s32.totalorder %s29, 0
      %p132 = por %p130, %p131
      %p133 = scmp.ne.s32.totalorder %s121, %s122
      %p134 = scmp.eq.s32.totalorder %s30, 1
      %p135 = por %p133, %p134
      %p137 = scmp.ne.s32.totalorder %s122, %s136
      %p138 = scmp.eq.s32.totalorder %s30, 0
      %p139 = por %p137, %p138
      %s141 = sadd.s32 %s140, 1
      %p144 = scmp.eq.s32.totalorder %s24, 1
      %p145 = scmp.ne.s32.totalorder %s140, %s142
      %p146 = scmp.eq.s32.totalorder %s24, 0
      %p147 = por %p145, %p146
      %p148 = scmp.ne.s32.totalorder %s140, %s142
      %p149 = scmp.eq.s32.totalorder %s29, 1
      %p150 = por %p148, %p149
      %p151 = scmp.ne.s32.totalorder %s142, %s143
      %p152 = scmp.eq.s32.totalorder %s29, 0
      %p153 = por %p151, %p152
      %p154 = scmp.ne.s32.totalorder %s142, %s143
      %p155 = scmp.eq.s32.totalorder %s30, 1
      %p156 = por %p154, %p155
      %p158 = scmp.ne.s32.totalorder %s143, %s157
      %p159 = scmp.eq.s32.totalorder %s30, 0
      %p160 = por %p158, %p159
      %s162 = sadd.s32 %s161, 1
      %p165 = scmp.eq.s32.totalorder %s24, 1
      %p166 = scmp.ne.s32.totalorder %s161, %s163
      %p167 = scmp.eq.s32.totalorder %s24, 0
      %p168 = por %p166, %p167
      %p169 = scmp.ne.s32.totalorder %s161, %s163
      %p170 = scmp.eq.s32.totalorder %s29, 1
      %p171 = por %p169, %p170
      %p172 = scmp.ne.s32.totalorder %s163, %s164
      %p173 = scmp.eq.s32.totalorder %s29, 0
      %p174 = por %p172, %p173
      %p175 = scmp.ne.s32.totalorder %s163, %s164
      %p176 = scmp.eq.s32.totalorder %s30, 1
      %p177 = por %p175, %p176
      %p179 = scmp.ne.s32.totalorder %s164, %s178
      %p180 = scmp.eq.s32.totalorder %s30, 0
      %p181 = por %p179, %p180
      %s183 = sadd.s32 %s182, 1
      %p186 = scmp.eq.s32.totalorder %s24, 1
      %p187 = scmp.ne.s32.totalorder %s182, %s184
      %p188 = scmp.eq.s32.totalorder %s24, 0
      %p189 = por %p187, %p188
      %p190 = scmp.ne.s32.totalorder %s182, %s184
      %p191 = scmp.eq.s32.totalorder %s29, 1
      %p192 = por %p190, %p191
      %p193 = scmp.ne.s32.totalorder %s184, %s185
      %p194 = scmp.eq.s32.totalorder %s29, 0
      %p195 = por %p193, %p194
      %p196 = scmp.ne.s32.totalorder %s184, %s185
      %p197 = scmp.eq.s32.totalorder %s30, 1
      %p198 = por %p196, %p197
      %p200 = scmp.ne.s32.totalorder %s185, %s199
      %p201 = scmp.eq.s32.totalorder %s30, 0
      %p202 = por %p200, %p201
      %s204 = sadd.s32 %s203, 1
      %p207 = scmp.eq.s32.totalorder %s24, 1
      %p208 = scmp.ne.s32.totalorder %s203, %s205
      %p209 = scmp.eq.s32.totalorder %s24, 0
      %p210 = por %p208, %p209
      %p211 = scmp.ne.s32.totalorder %s203, %s205
      %p212 = scmp.eq.s32.totalorder %s29, 1
      %p213 = por %p211, %p212
      %p214 = scmp.ne.s32.totalorder %s205, %s206
      %p215 = scmp.eq.s32.totalorder %s29, 0
      %p216 = por %p214, %p215
      %p217 = scmp.ne.s32.totalorder %s205, %s206
      %p218 = scmp.eq.s32.totalorder %s30, 1
      %p219 = por %p217, %p218
      %p221 = scmp.ne.s32.totalorder %s206, %s220
      %p222 = scmp.eq.s32.totalorder %s30, 0
      %p223 = por %p221, %p222
      %s224 = ssub.s32 %s31, %s43
      %s225 = ssub.s32 %s32, %s39
      %s226 = sor.u32 %s224, %s225
      %p227 = scmp.eq.s32.totalorder %s226, 0
      %s229 = sadd.s32 %s228, 1
      %s230 = scalar_select %p227, %s228, %s229
      %p233 = pneg %p227
      %p234 = scmp.eq.s32.totalorder %s24, 1
      %p235 = por %p233, %p234
      %p236 = scmp.ne.s32.totalorder %s228, %s231
      %p237 = scmp.eq.s32.totalorder %s24, 0
      %p238 = por %p236, %p237
      %p239 = scmp.ne.s32.totalorder %s228, %s231
      %p240 = scmp.eq.s32.totalorder %s29, 1
      %p241 = por %p239, %p240
      %p242 = scmp.ne.s32.totalorder %s231, %s232
      %p243 = scmp.eq.s32.totalorder %s29, 0
      %p244 = por %p242, %p243
      %p245 = scmp.ne.s32.totalorder %s231, %s232
      %p246 = scmp.eq.s32.totalorder %s30, 1
      %p247 = por %p245, %p246
      %p249 = scmp.ne.s32.totalorder %s232, %s248
      %p250 = scmp.eq.s32.totalorder %s30, 0
      %p251 = por %p249, %p250
      %p252 = scmp.le.s32.totalorder 1, %s24
      %p253 = scmp.lt.s32.totalorder %s24, 3
      %p254 = pnand %p252, %p253
      %p255 = pneg %p254
      // Predicated region
      $region9: #{tpu_custom_call.1} parent=5 // pred_check
        _
      $region10: #{tpu_custom_call.1} parent=5 // pred_check_branch
        %257 = sbr.rel (%p254) target = $region12
      $region11: #{tpu_custom_call.1} parent=5 // pred_region
        %s258 = ssub.s32 %s24, 1
        // Predicated region
        $region13: #{tpu_custom_call.1} parent=11 // pred_check
          %p259 = pneg %p111
        $region14: #{tpu_custom_call.1} parent=11 // pred_check_branch
          %261 = sbr.rel (%p259) target = $region16
        $region15: #{tpu_custom_call.1} parent=11 // pred_region
          %s263 = ssub.s32 512, 512
          %264 = vsyncadd [#allocation9], %s263
          %s265 = sshll.u32 [#allocation10], 4
          %s266 = int_to_ptr.vmem [resolvable:$true] %s265
          %271 = dma.hbm_to_vmem [thread:$0]  %s2, 512, %s266, [#allocation9], 128, 128, 8
        $region16: #{tpu_custom_call.1} parent=11 // pred_fallthru
          _
        // Predicated region
        $region17: #{tpu_custom_call.1} parent=11 // pred_check
          %p272 = pneg %p132
        $region18: #{tpu_custom_call.1} parent=11 // pred_check_branch
          %274 = sbr.rel (%p272) target = $region20
        $region19: #{tpu_custom_call.1} parent=11 // pred_region
          _
        $region20: #{tpu_custom_call.1} parent=11 // pred_fallthru
          _
        // Predicated region
        $region21: #{tpu_custom_call.1} parent=11 // pred_check
          %p275 = pneg %p153
        $region22: #{tpu_custom_call.1} parent=11 // pred_check_branch
          %277 = sbr.rel (%p275) target = $region24
        $region23: #{tpu_custom_call.1} parent=11 // pred_region
          %s279 = ssub.s32 512, 512
          %280 = vsyncadd [#allocation12], %s279
          %s281 = sshll.u32 [#allocation11], 4
          %s282 = int_to_ptr.vmem [resolvable:$true] %s281
          %287 = dma.hbm_to_vmem [thread:$0]  %s4, 512, %s282, [#allocation12], 128, 128, 8
        $region24: #{tpu_custom_call.1} parent=11 // pred_fallthru
          _
        // Predicated region
        $region25: #{tpu_custom_call.1} parent=11 // pred_check
          %p288 = pneg %p174
        $region26: #{tpu_custom_call.1} parent=11 // pred_check_branch
          %290 = sbr.rel (%p288) target = $region28
        $region27: #{tpu_custom_call.1} parent=11 // pred_region
          _
        $region28: #{tpu_custom_call.1} parent=11 // pred_fallthru
          _
        // Predicated region
        $region29: #{tpu_custom_call.1} parent=11 // pred_check
          %p291 = pneg %p195
        $region30: #{tpu_custom_call.1} parent=11 // pred_check_branch
          %293 = sbr.rel (%p291) target = $region32
        $region31: #{tpu_custom_call.1} parent=11 // pred_region
          %s295 = ssub.s32 512, 512
          %296 = vsyncadd [#allocation12], %s295
          %s297 = sshll.u32 [#allocation13], 4
          %s298 = int_to_ptr.vmem [resolvable:$true] %s297
          %303 = dma.hbm_to_vmem [thread:$0]  %s6, 512, %s298, [#allocation12], 128, 128, 8
        $region32: #{tpu_custom_call.1} parent=11 // pred_fallthru
          _
        // Predicated region
        $region33: #{tpu_custom_call.1} parent=11 // pred_check
          %p304 = pneg %p216
        $region34: #{tpu_custom_call.1} parent=11 // pred_check_branch
          %306 = sbr.rel (%p304) target = $region36
        $region35: #{tpu_custom_call.1} parent=11 // pred_region
          _
        $region36: #{tpu_custom_call.1} parent=11 // pred_fallthru
          _
      $region12: #{tpu_custom_call.1} parent=5 // pred_fallthru
        _
      %p307 = scmp.lt.s32.totalorder %s24, 2
      // Predicated region
      $region37: #{tpu_custom_call.1} parent=5 // pred_check
        %p308 = pneg %p307
      $region38: #{tpu_custom_call.1} parent=5 // pred_check_branch
        %310 = sbr.rel (%p308) target = $region40
      $region39: #{tpu_custom_call.1} parent=5 // pred_region
        // Predicated region
        $region41: #{tpu_custom_call.1} parent=39 // pred_check
          %p311 = pneg %p56
        $region42: #{tpu_custom_call.1} parent=39 // pred_check_branch
          %313 = sbr.rel (%p311) target = $region44
        $region43: #{tpu_custom_call.1} parent=39 // pred_region
          %s314 = sand.u32 %s46, 1
          %s315 = scalar_lea.sflag [#allocation6], %s314
          %s316 = sand.u32 %s46, 1
          %s317 = smul.addr %s316, 8
          %s318 = scalar_lea.vmem [#allocation5], %s317
          %s320 = ssub.s32 128, 128
          %321 = vsyncadd %s315, %s320
          %s322 = smul.addr %s31, 128
          %s323 = scalar_lea.hbm %s0, %s322
          %s325 = sshll.u32 %s318, 4
          %s326 = int_to_ptr.vmem [resolvable:$true] %s325
          %328 = dma.hbm_to_vmem [thread:$0]  %s323, 128, %s326, %s315
        $region44: #{tpu_custom_call.1} parent=39 // pred_fallthru
          _
        // Predicated region
        $region45: #{tpu_custom_call.1} parent=39 // pred_check
          %p329 = pneg %p84
        $region46: #{tpu_custom_call.1} parent=39 // pred_check_branch
          %331 = sbr.rel (%p329) target = $region48
        $region47: #{tpu_custom_call.1} parent=39 // pred_region
          %s332 = sand.u32 %s24, 1
          %s333 = scalar_lea.sflag [#allocation9], %s332
          %s334 = sand.u32 %s74, 1
          %s335 = smul.addr %s334, 8
          %s336 = scalar_lea.vmem [#allocation8], %s335
          %s338 = ssub.s32 128, 128
          %339 = vsyncadd %s333, %s338
          %s340 = sadd.s32 %s32, %s31
          %s341 = smul.addr %s340, 128
          %s342 = scalar_lea.hbm %s1, %s341
          %s344 = sshll.u32 %s336, 4
          %s345 = int_to_ptr.vmem [resolvable:$true] %s344
          %347 = dma.hbm_to_vmem [thread:$0]  %s342, 128, %s345, %s333
        $region48: #{tpu_custom_call.1} parent=39 // pred_fallthru
          _
      $region40: #{tpu_custom_call.1} parent=5 // pred_fallthru
        _
      %p348 = scmp.le.s32.totalorder 1, %s24
      %p349 = scmp.lt.s32.totalorder %s24, 3
      %p350 = pnand %p348, %p349
      %p351 = pneg %p350
      // Predicated region
      $region49: #{tpu_custom_call.1} parent=5 // pred_check
        _
      $region50: #{tpu_custom_call.1} parent=5 // pred_check_branch
        %353 = sbr.rel (%p350) target = $region52
      $region51: #{tpu_custom_call.1} parent=5 // pred_region
        %s354 = ssub.s32 %s24, 1
        %s355 = sand.u32 %s49, 1
        %s356 = scalar_lea.sflag [#allocation6], %s355
        %s357 = sand.u32 %s49, 1
        %s358 = smul.addr %s357, 8
        %s359 = scalar_lea.vmem [#allocation5], %s358
        // Predicated region
        $region53: #{tpu_custom_call.1} parent=51 // pred_check
          %p360 = pneg %p62
        $region54: #{tpu_custom_call.1} parent=51 // pred_check_branch
          %362 = sbr.rel (%p360) target = $region56
        $region55: #{tpu_custom_call.1} parent=51 // pred_region
          %363 = dma.done %s356, 128
        $region56: #{tpu_custom_call.1} parent=51 // pred_fallthru
          _
        %s364 = sand.u32 %s29, 1
        %s365 = scalar_lea.sflag [#allocation9], %s364
        %s366 = sand.u32 %s77, 1
        %s367 = smul.addr %s366, 8
        %s368 = scalar_lea.vmem [#allocation8], %s367
        // Predicated region
        $region57: #{tpu_custom_call.1} parent=51 // pred_check
          %p369 = pneg %p90
        $region58: #{tpu_custom_call.1} parent=51 // pred_check_branch
          %371 = sbr.rel (%p369) target = $region60
        $region59: #{tpu_custom_call.1} parent=51 // pred_region
          %372 = dma.done %s365, 128
        $region60: #{tpu_custom_call.1} parent=51 // pred_fallthru
          _
        // Predicated region
        $region61: #{tpu_custom_call.1} parent=51 // pred_check
          %p373 = pneg %p111
        $region62: #{tpu_custom_call.1} parent=51 // pred_check_branch
          %375 = sbr.rel (%p373) target = $region64
        $region63: #{tpu_custom_call.1} parent=51 // pred_region
          %376 = dma.done [#allocation9], 512
        $region64: #{tpu_custom_call.1} parent=51 // pred_fallthru
          _
        // Predicated region
        $region65: #{tpu_custom_call.1} parent=51 // pred_check
          %p377 = pneg %p153
        $region66: #{tpu_custom_call.1} parent=51 // pred_check_branch
          %379 = sbr.rel (%p377) target = $region68
        $region67: #{tpu_custom_call.1} parent=51 // pred_region
          %380 = dma.done [#allocation12], 512
        $region68: #{tpu_custom_call.1} parent=51 // pred_fallthru
          _
        // Predicated region
        $region69: #{tpu_custom_call.1} parent=51 // pred_check
          %p381 = pneg %p195
        $region70: #{tpu_custom_call.1} parent=51 // pred_check_branch
          %383 = sbr.rel (%p381) target = $region72
        $region71: #{tpu_custom_call.1} parent=51 // pred_region
          %384 = dma.done [#allocation12], 512
        $region72: #{tpu_custom_call.1} parent=51 // pred_fallthru
          _
        %s385 = sand.u32 %s49, 1
        %s386 = scalar_lea.sflag [#allocation6], %s385
        %s387 = sand.u32 %s49, 1
        %s388 = smul.addr %s387, 8
        %s389 = scalar_lea.vmem [#allocation5], %s388
        %p390 = pneg %p62
        %p391 = pneg %p59
        %s392 = sand.u32 %s29, 1
        %s393 = scalar_lea.sflag [#allocation9], %s392
        %s394 = sand.u32 %s77, 1
        %s395 = smul.addr %s394, 8
        %s396 = scalar_lea.vmem [#allocation8], %s395
        %p397 = pneg %p90
        %p398 = pneg %p87
        %p399 = pneg %p111
        %p400 = pneg %p108
        %p401 = pneg %p132
        %p402 = pneg %p129
        %p403 = pneg %p153
        %p404 = pneg %p150
        %p405 = pneg %p174
        %p406 = pneg %p171
        %p407 = pneg %p195
        %p408 = pneg %p192
        %p409 = pneg %p216
        %p410 = pneg %p213
        %p411 = pneg %p244
        %p412 = pneg %p241
        %s413 = sand.u32 %s231, 1
        %s414 = scalar_lea.sflag [#allocation7], %s413
        %s415 = sand.u32 %s231, 1
        %s416 = smul.addr %s415, 8
        %s417 = scalar_lea.vmem [#allocation14], %s416
        %p418 = scmp.eq.s32.totalorder %s34, 0
        // Predicated region
        $region73: #{tpu_custom_call.1} parent=51 // pred_check
          %p419 = pneg %p418
        $region74: #{tpu_custom_call.1} parent=51 // pred_check_branch
          %421 = sbr.rel (%p419) target = $region76
        $region75: #{tpu_custom_call.1} parent=51 // pred_region
          %v422 = vld [vmem:[%s359] sm:$0xff]
          %v423 = vld [vmem:[#allocation11] sm:$0xff]
          %v424 = vld [vmem:[#allocation11 + $0x8] sm:$0xff]
          %v425 = vld [vmem:[#allocation11 + $0x10] sm:$0xff]
          %v426 = vld [vmem:[#allocation11 + $0x18] sm:$0xff]
          %v427 = vld [vmem:[%s5] sm:$0x1]
          %v429 = vlaneseq
          %v430 = vshrl.u32 %v429, 7
          %v431 = vsub.s32 0, %v430
          %v432 = vrot.slane %v427, %v431
          %vm434 = vcmask 261120
          %v436 = vsel %vm434, %v422, 0
          %438 = vmatprep.subr.mxu0 0.0
          %439 = vmatpush1.msra.mxu0 0.0
          %440 = vmatprep.subr.mxu0 0.0
          %441 = vmatpush1.msra.mxu0 0.0
          %442 = vmatprep.subr.mxu0 0.0
          %443 = vmatpush1.msra.mxu0 0.0
          %444 = vmatprep.subr.mxu0 0.0
          %445 = vmatpush1.msra.mxu0 0.0
          %446 = vmatprep.subr.mxu0 0.0
          %447 = vmatpush1.msra.mxu0 0.0
          %448 = vmatprep.subr.mxu0 0.0
          %449 = vmatpush1.msra.mxu0 0.0
          %450 = vmatprep.subr.mxu0 0.0
          %451 = vmatpush1.msra.mxu0 0.0
          %452 = vmatprep.subr.mxu0 0.0
          %453 = vmatpush1.msra.mxu0 0.0
          %454 = vmatprep.subr.mxu0 0.0
          %455 = vmatpush1.msra.mxu0 0.0
          %456 = vmatprep.subr.mxu0 0.0
          %457 = vmatpush1.msra.mxu0 0.0
          %458 = vmatprep.subr.mxu0 0.0
          %459 = vmatpush1.msra.mxu0 0.0
          %460 = vmatprep.subr.mxu0 0.0
          %461 = vmatpush1.msra.mxu0 0.0
          %462 = vmatprep.subr.mxu0 0.0
          %463 = vmatpush1.msra.mxu0 %v426
          %464 = vmatprep.subr.mxu0 0.0
          %465 = vmatpush1.msra.mxu0 %v425
          %466 = vmatprep.subr.mxu0 0.0
          %467 = vmatpush1.msra.mxu0 %v424
          %468 = vmatprep.subr.mxu0 0.0
          %469 = vmatpush1.msra.mxu0 %v423
          %470 = vmatprep.subr.mxu0 0.0
          %471 = vmatpush2.msra.mxu0 0.0
          %472 = vmatprep.subr.mxu0 0.0
          %473 = vmatpush2.msra.mxu0 0.0
          %474 = vmatprep.subr.mxu0 0.0
          %475 = vmatpush2.msra.mxu0 0.0
          %476 = vmatprep.subr.mxu0 0.0
          %477 = vmatpush2.msra.mxu0 0.0
          %478 = vmatprep.subr.mxu0 0.0
          %479 = vmatpush2.msra.mxu0 0.0
          %480 = vmatprep.subr.mxu0 0.0
          %481 = vmatpush2.msra.mxu0 0.0
          %482 = vmatprep.subr.mxu0 0.0
          %483 = vmatpush2.msra.mxu0 0.0
          %484 = vmatprep.subr.mxu0 0.0
          %485 = vmatpush2.msra.mxu0 0.0
          %486 = vmatprep.subr.mxu0 0.0
          %487 = vmatpush2.msra.mxu0 0.0
          %488 = vmatprep.subr.mxu0 0.0
          %489 = vmatpush2.msra.mxu0 0.0
          %490 = vmatprep.subr.mxu0 0.0
          %491 = vmatpush2.msra.mxu0 0.0
          %492 = vmatprep.subr.mxu0 0.0
          %493 = vmatpush2.msra.mxu0 0.0
          %494 = vmatprep.subr.mxu0 0.0
          %495 = vmatpush2.msra.mxu0 0.0
          %496 = vmatprep.subr.mxu0 0.0
          %497 = vmatpush2.msra.mxu0 0.0
          %498 = vmatprep.subr.mxu0 0.0
          %499 = vmatpush2.msra.mxu0 0.0
          %500 = vmatprep.subr.mxu0 0.0
          %501 = vmatpush2.msra.mxu0 0.0
          %502 = vmatprep.mubr.f32.mxu0 0.0
          %503 = vmatmul.mubr.f32.gmra.mxu0 %v436
          %v504 = vpop.f32.mrf.mxu0
          %v505 = vadd.f32 %v432, %v504
          %v506 = vpop.f32.mrf.mxu0
          %507 = vdwg.mxu0
          %508 = vst.msk [vmem:[#allocation2] sm:$0xff] %vm434, %v505
          %510 = vrot.lane.b32.xlu0 %v505, 96
          %v511 = vpop.permute.xlu0 %510
          %513 = vst.msk [vmem:[#allocation3] sm:$0xff] %vm434, %v511
        $region76: #{tpu_custom_call.1} parent=51 // pred_fallthru
          _
        %v514 = vld [vmem:[%s368] sm:$0xff]
        %v515 = vld [vmem:[#allocation10] sm:$0xff]
        %v516 = vld [vmem:[#allocation10 + $0x8] sm:$0xff]
        %v517 = vld [vmem:[#allocation10 + $0x10] sm:$0xff]
        %v518 = vld [vmem:[#allocation10 + $0x18] sm:$0xff]
        %v519 = vld [vmem:[%s3] sm:$0x1]
        %v521 = vlaneseq
        %v522 = vshrl.u32 %v521, 7
        %v523 = vsub.s32 0, %v522
        %v524 = vrot.slane %v519, %v523
        %vm526 = vcmask 261120
        %v528 = vsel %vm526, %v514, 0
        %530 = vmatprep.subr.mxu0 0.0
        %531 = vmatpush1.msra.mxu0 0.0
        %532 = vmatprep.subr.mxu0 0.0
        %533 = vmatpush1.msra.mxu0 0.0
        %534 = vmatprep.subr.mxu0 0.0
        %535 = vmatpush1.msra.mxu0 0.0
        %536 = vmatprep.subr.mxu0 0.0
        %537 = vmatpush1.msra.mxu0 0.0
        %538 = vmatprep.subr.mxu0 0.0
        %539 = vmatpush1.msra.mxu0 0.0
        %540 = vmatprep.subr.mxu0 0.0
        %541 = vmatpush1.msra.mxu0 0.0
        %542 = vmatprep.subr.mxu0 0.0
        %543 = vmatpush1.msra.mxu0 0.0
        %544 = vmatprep.subr.mxu0 0.0
        %545 = vmatpush1.msra.mxu0 0.0
        %546 = vmatprep.subr.mxu0 0.0
        %547 = vmatpush1.msra.mxu0 0.0
        %548 = vmatprep.subr.mxu0 0.0
        %549 = vmatpush1.msra.mxu0 0.0
        %550 = vmatprep.subr.mxu0 0.0
        %551 = vmatpush1.msra.mxu0 0.0
        %552 = vmatprep.subr.mxu0 0.0
        %553 = vmatpush1.msra.mxu0 0.0
        %554 = vmatprep.subr.mxu0 0.0
        %555 = vmatpush1.msra.mxu0 %v518
        %556 = vmatprep.subr.mxu0 0.0
        %557 = vmatpush1.msra.mxu0 %v517
        %558 = vmatprep.subr.mxu0 0.0
        %559 = vmatpush1.msra.mxu0 %v516
        %560 = vmatprep.subr.mxu0 0.0
        %561 = vmatpush1.msra.mxu0 %v515
        %562 = vmatprep.subr.mxu0 0.0
        %563 = vmatpush2.msra.mxu0 0.0
        %564 = vmatprep.subr.mxu0 0.0
        %565 = vmatpush2.msra.mxu0 0.0
        %566 = vmatprep.subr.mxu0 0.0
        %567 = vmatpush2.msra.mxu0 0.0
        %568 = vmatprep.subr.mxu0 0.0
        %569 = vmatpush2.msra.mxu0 0.0
        %570 = vmatprep.subr.mxu0 0.0
        %571 = vmatpush2.msra.mxu0 0.0
        %572 = vmatprep.subr.mxu0 0.0
        %573 = vmatpush2.msra.mxu0 0.0
        %574 = vmatprep.subr.mxu0 0.0
        %575 = vmatpush2.msra.mxu0 0.0
        %576 = vmatprep.subr.mxu0 0.0
        %577 = vmatpush2.msra.mxu0 0.0
        %578 = vmatprep.subr.mxu0 0.0
        %579 = vmatpush2.msra.mxu0 0.0
        %580 = vmatprep.subr.mxu0 0.0
        %581 = vmatpush2.msra.mxu0 0.0
        %582 = vmatprep.subr.mxu0 0.0
        %583 = vmatpush2.msra.mxu0 0.0
        %584 = vmatprep.subr.mxu0 0.0
        %585 = vmatpush2.msra.mxu0 0.0
        %586 = vmatprep.subr.mxu0 0.0
        %587 = vmatpush2.msra.mxu0 0.0
        %588 = vmatprep.subr.mxu0 0.0
        %589 = vmatpush2.msra.mxu0 0.0
        %590 = vmatprep.subr.mxu0 0.0
        %591 = vmatpush2.msra.mxu0 0.0
        %592 = vmatprep.subr.mxu0 0.0
        %593 = vmatpush2.msra.mxu0 0.0
        %594 = vmatprep.mubr.f32.mxu0 0.0
        %595 = vmatmul.mubr.f32.gmra.mxu0 %v528
        %v596 = vpop.f32.mrf.mxu0
        %v597 = vadd.f32 %v524, %v596
        %v598 = vpop.f32.mrf.mxu0
        %599 = vdwg.mxu0
        %v600 = vld [vmem:[#allocation2] sm:$0xff]
        %v601 = vld [vmem:[#allocation3] sm:$0xff]
        %vm602 = vcmask 64512
        %v604 = vsel %vm602, %v597, 0
        %v607 = vsel %vm602, %v600, 0
        %609 = vmatprep.subr.mxu0 0.0
        %610 = vmatpush1.xpose.msra.mxu0 0.0
        %611 = vmatprep.subr.mxu0 0.0
        %612 = vmatpush1.xpose.msra.mxu0 0.0
        %613 = vmatprep.subr.mxu0 0.0
        %614 = vmatpush1.xpose.msra.mxu0 0.0
        %615 = vmatprep.subr.mxu0 0.0
        %616 = vmatpush1.xpose.msra.mxu0 0.0
        %617 = vmatprep.subr.mxu0 0.0
        %618 = vmatpush1.xpose.msra.mxu0 0.0
        %619 = vmatprep.subr.mxu0 0.0
        %620 = vmatpush1.xpose.msra.mxu0 0.0
        %621 = vmatprep.subr.mxu0 0.0
        %622 = vmatpush1.xpose.msra.mxu0 0.0
        %623 = vmatprep.subr.mxu0 0.0
        %624 = vmatpush1.xpose.msra.mxu0 0.0
        %625 = vmatprep.subr.mxu0 0.0
        %626 = vmatpush1.xpose.msra.mxu0 0.0
        %627 = vmatprep.subr.mxu0 0.0
        %628 = vmatpush1.xpose.msra.mxu0 0.0
        %629 = vmatprep.subr.mxu0 0.0
        %630 = vmatpush1.xpose.msra.mxu0 0.0
        %631 = vmatprep.subr.mxu0 0.0
        %632 = vmatpush1.xpose.msra.mxu0 0.0
        %633 = vmatprep.subr.mxu0 0.0
        %634 = vmatpush1.xpose.msra.mxu0 0.0
        %635 = vmatprep.subr.mxu0 0.0
        %636 = vmatpush1.xpose.msra.mxu0 0.0
        %637 = vmatprep.subr.mxu0 0.0
        %638 = vmatpush1.xpose.msra.mxu0 0.0
        %639 = vmatprep.subr.mxu0 0.0
        %640 = vmatpush1.xpose.msra.mxu0 %v607
        %641 = vmatprep.subr.mxu0 0.0
        %642 = vmatpush2.xpose.msra.mxu0 0.0
        %643 = vmatprep.subr.mxu0 0.0
        %644 = vmatpush2.xpose.msra.mxu0 0.0
        %645 = vmatprep.subr.mxu0 0.0
        %646 = vmatpush2.xpose.msra.mxu0 0.0
        %647 = vmatprep.subr.mxu0 0.0
        %648 = vmatpush2.xpose.msra.mxu0 0.0
        %649 = vmatprep.subr.mxu0 0.0
        %650 = vmatpush2.xpose.msra.mxu0 0.0
        %651 = vmatprep.subr.mxu0 0.0
        %652 = vmatpush2.xpose.msra.mxu0 0.0
        %653 = vmatprep.subr.mxu0 0.0
        %654 = vmatpush2.xpose.msra.mxu0 0.0
        %655 = vmatprep.subr.mxu0 0.0
        %656 = vmatpush2.xpose.msra.mxu0 0.0
        %657 = vmatprep.subr.mxu0 0.0
        %658 = vmatpush2.xpose.msra.mxu0 0.0
        %659 = vmatprep.subr.mxu0 0.0
        %660 = vmatpush2.xpose.msra.mxu0 0.0
        %661 = vmatprep.subr.mxu0 0.0
        %662 = vmatpush2.xpose.msra.mxu0 0.0
        %663 = vmatprep.subr.mxu0 0.0
        %664 = vmatpush2.xpose.msra.mxu0 0.0
        %665 = vmatprep.subr.mxu0 0.0
        %666 = vmatpush2.xpose.msra.mxu0 0.0
        %667 = vmatprep.subr.mxu0 0.0
        %668 = vmatpush2.xpose.msra.mxu0 0.0
        %669 = vmatprep.subr.mxu0 0.0
        %670 = vmatpush2.xpose.msra.mxu0 0.0
        %671 = vmatprep.subr.mxu0 0.0
        %672 = vmatpush2.xpose.msra.mxu0 0.0
        %673 = vmatprep.mubr.f32.mxu0 0.0
        %674 = vmatmul.mubr.f32.gmra.mxu0 %v604
        %v675 = vpop.f32.mrf.mxu0
        %v676 = vadd.f32 0.0, %v675
        %v677 = vpop.f32.mrf.mxu0
        %678 = vdwg.mxu0
        %v679 = vsel %vm602, %v676, -inf
        %680 = vmax.xlane.f32.xlu0 %v679
        %v681 = vpop.xlane.xlu0 %680
        %v682 = vsub.f32 %v676, %v681
        %v683 = vmul.f32 %v682, 1.442695
        %v684 = vpow.pop %v683
        %v685 = vsel %vm602, %v684, 0.0
        %686 = vadd.xlane.f32.xlu0 %v685
        %v687 = vpop.xlane.xlu0 %686
        %v688 = vrcp.pop %v687
        %v690 = vsel %vm602, %v684, 0
        %692 = vmatprep.subr.mxu0 0.0
        %693 = vmatpush1.msra.mxu0 0.0
        %694 = vmatprep.subr.mxu0 0.0
        %695 = vmatpush1.msra.mxu0 0.0
        %696 = vmatprep.subr.mxu0 0.0
        %697 = vmatpush1.msra.mxu0 0.0
        %698 = vmatprep.subr.mxu0 0.0
        %699 = vmatpush1.msra.mxu0 0.0
        %700 = vmatprep.subr.mxu0 0.0
        %701 = vmatpush1.msra.mxu0 0.0
        %702 = vmatprep.subr.mxu0 0.0
        %703 = vmatpush1.msra.mxu0 0.0
        %704 = vmatprep.subr.mxu0 0.0
        %705 = vmatpush1.msra.mxu0 0.0
        %706 = vmatprep.subr.mxu0 0.0
        %707 = vmatpush1.msra.mxu0 0.0
        %708 = vmatprep.subr.mxu0 0.0
        %709 = vmatpush1.msra.mxu0 0.0
        %710 = vmatprep.subr.mxu0 0.0
        %711 = vmatpush1.msra.mxu0 0.0
        %712 = vmatprep.subr.mxu0 0.0
        %713 = vmatpush1.msra.mxu0 0.0
        %714 = vmatprep.subr.mxu0 0.0
        %715 = vmatpush1.msra.mxu0 0.0
        %716 = vmatprep.subr.mxu0 0.0
        %717 = vmatpush1.msra.mxu0 0.0
        %718 = vmatprep.subr.mxu0 0.0
        %719 = vmatpush1.msra.mxu0 0.0
        %720 = vmatprep.subr.mxu0 0.0
        %721 = vmatpush1.msra.mxu0 0.0
        %722 = vmatprep.subr.mxu0 0.0
        %723 = vmatpush1.msra.mxu0 %v601
        %724 = vmatprep.subr.mxu0 0.0
        %725 = vmatpush2.msra.mxu0 0.0
        %726 = vmatprep.subr.mxu0 0.0
        %727 = vmatpush2.msra.mxu0 0.0
        %728 = vmatprep.subr.mxu0 0.0
        %729 = vmatpush2.msra.mxu0 0.0
        %730 = vmatprep.subr.mxu0 0.0
        %731 = vmatpush2.msra.mxu0 0.0
        %732 = vmatprep.subr.mxu0 0.0
        %733 = vmatpush2.msra.mxu0 0.0
        %734 = vmatprep.subr.mxu0 0.0
        %735 = vmatpush2.msra.mxu0 0.0
        %736 = vmatprep.subr.mxu0 0.0
        %737 = vmatpush2.msra.mxu0 0.0
        %738 = vmatprep.subr.mxu0 0.0
        %739 = vmatpush2.msra.mxu0 0.0
        %740 = vmatprep.subr.mxu0 0.0
        %741 = vmatpush2.msra.mxu0 0.0
        %742 = vmatprep.subr.mxu0 0.0
        %743 = vmatpush2.msra.mxu0 0.0
        %744 = vmatprep.subr.mxu0 0.0
        %745 = vmatpush2.msra.mxu0 0.0
        %746 = vmatprep.subr.mxu0 0.0
        %747 = vmatpush2.msra.mxu0 0.0
        %748 = vmatprep.subr.mxu0 0.0
        %749 = vmatpush2.msra.mxu0 0.0
        %750 = vmatprep.subr.mxu0 0.0
        %751 = vmatpush2.msra.mxu0 0.0
        %752 = vmatprep.subr.mxu0 0.0
        %753 = vmatpush2.msra.mxu0 0.0
        %754 = vmatprep.subr.mxu0 0.0
        %755 = vmatpush2.msra.mxu0 0.0
        %756 = vmatprep.mubr.f32.mxu0 0.0
        %757 = vmatmul.mubr.f32.gmra.mxu0 %v690
        %v758 = vpop.f32.mrf.mxu0
        %v759 = vadd.f32 0.0, %v758
        %v760 = vpop.f32.mrf.mxu0
        %761 = vdwg.mxu0
        %v762 = vmul.f32 %v759, %v688
        %763 = vst.msk [vmem:[#allocation4] sm:$0xff] %vm602, %v762
        %v764 = vld [vmem:[#allocation2] sm:$0xff]
        %v765 = vld [vmem:[#allocation3] sm:$0xff]
        %766 = vrot.lane.b32.xlu0 %v597, 120
        %v767 = vpop.permute.xlu0 %766
        %769 = vrot.lane.b32.xlu0 %v764, 120
        %v770 = vpop.permute.xlu0 %769
        %v771 = vsel %vm602, %v767, 0
        %v773 = vsel %vm602, %v770, 0
        %775 = vmatprep.subr.mxu0 0.0
        %776 = vmatpush1.xpose.msra.mxu0 0.0
        %777 = vmatprep.subr.mxu0 0.0
        %778 = vmatpush1.xpose.msra.mxu0 0.0
        %779 = vmatprep.subr.mxu0 0.0
        %780 = vmatpush1.xpose.msra.mxu0 0.0
        %781 = vmatprep.subr.mxu0 0.0
        %782 = vmatpush1.xpose.msra.mxu0 0.0
        %783 = vmatprep.subr.mxu0 0.0
        %784 = vmatpush1.xpose.msra.mxu0 0.0
        %785 = vmatprep.subr.mxu0 0.0
        %786 = vmatpush1.xpose.msra.mxu0 0.0
        %787 = vmatprep.subr.mxu0 0.0
        %788 = vmatpush1.xpose.msra.mxu0 0.0
        %789 = vmatprep.subr.mxu0 0.0
        %790 = vmatpush1.xpose.msra.mxu0 0.0
        %791 = vmatprep.subr.mxu0 0.0
        %792 = vmatpush1.xpose.msra.mxu0 0.0
        %793 = vmatprep.subr.mxu0 0.0
        %794 = vmatpush1.xpose.msra.mxu0 0.0
        %795 = vmatprep.subr.mxu0 0.0
        %796 = vmatpush1.xpose.msra.mxu0 0.0
        %797 = vmatprep.subr.mxu0 0.0
        %798 = vmatpush1.xpose.msra.mxu0 0.0
        %799 = vmatprep.subr.mxu0 0.0
        %800 = vmatpush1.xpose.msra.mxu0 0.0
        %801 = vmatprep.subr.mxu0 0.0
        %802 = vmatpush1.xpose.msra.mxu0 0.0
        %803 = vmatprep.subr.mxu0 0.0
        %804 = vmatpush1.xpose.msra.mxu0 0.0
        %805 = vmatprep.subr.mxu0 0.0
        %806 = vmatpush1.xpose.msra.mxu0 %v773
        %807 = vmatprep.subr.mxu0 0.0
        %808 = vmatpush2.xpose.msra.mxu0 0.0
        %809 = vmatprep.subr.mxu0 0.0
        %810 = vmatpush2.xpose.msra.mxu0 0.0
        %811 = vmatprep.subr.mxu0 0.0
        %812 = vmatpush2.xpose.msra.mxu0 0.0
        %813 = vmatprep.subr.mxu0 0.0
        %814 = vmatpush2.xpose.msra.mxu0 0.0
        %815 = vmatprep.subr.mxu0 0.0
        %816 = vmatpush2.xpose.msra.mxu0 0.0
        %817 = vmatprep.subr.mxu0 0.0
        %818 = vmatpush2.xpose.msra.mxu0 0.0
        %819 = vmatprep.subr.mxu0 0.0
        %820 = vmatpush2.xpose.msra.mxu0 0.0
        %821 = vmatprep.subr.mxu0 0.0
        %822 = vmatpush2.xpose.msra.mxu0 0.0
        %823 = vmatprep.subr.mxu0 0.0
        %824 = vmatpush2.xpose.msra.mxu0 0.0
        %825 = vmatprep.subr.mxu0 0.0
        %826 = vmatpush2.xpose.msra.mxu0 0.0
        %827 = vmatprep.subr.mxu0 0.0
        %828 = vmatpush2.xpose.msra.mxu0 0.0
        %829 = vmatprep.subr.mxu0 0.0
        %830 = vmatpush2.xpose.msra.mxu0 0.0
        %831 = vmatprep.subr.mxu0 0.0
        %832 = vmatpush2.xpose.msra.mxu0 0.0
        %833 = vmatprep.subr.mxu0 0.0
        %834 = vmatpush2.xpose.msra.mxu0 0.0
        %835 = vmatprep.subr.mxu0 0.0
        %836 = vmatpush2.xpose.msra.mxu0 0.0
        %837 = vmatprep.subr.mxu0 0.0
        %838 = vmatpush2.xpose.msra.mxu0 0.0
        %839 = vmatprep.mubr.f32.mxu0 0.0
        %840 = vmatmul.mubr.f32.gmra.mxu0 %v771
        %v841 = vpop.f32.mrf.mxu0
        %v842 = vadd.f32 0.0, %v841
        %v843 = vpop.f32.mrf.mxu0
        %844 = vdwg.mxu0
        %v845 = vsel %vm602, %v842, -inf
        %846 = vmax.xlane.f32.xlu0 %v845
        %v847 = vpop.xlane.xlu0 %846
        %v848 = vsub.f32 %v842, %v847
        %v849 = vmul.f32 %v848, 1.442695
        %v850 = vpow.pop %v849
        %v851 = vsel %vm602, %v850, 0.0
        %852 = vadd.xlane.f32.xlu0 %v851
        %v853 = vpop.xlane.xlu0 %852
        %v854 = vrcp.pop %v853
        %856 = vrot.lane.b32.xlu0 %v765, 120
        %v857 = vpop.permute.xlu0 %856
        %v860 = vsel %vm602, %v850, 0
        %862 = vmatprep.subr.mxu0 0.0
        %863 = vmatpush1.msra.mxu0 0.0
        %864 = vmatprep.subr.mxu0 0.0
        %865 = vmatpush1.msra.mxu0 0.0
        %866 = vmatprep.subr.mxu0 0.0
        %867 = vmatpush1.msra.mxu0 0.0
        %868 = vmatprep.subr.mxu0 0.0
        %869 = vmatpush1.msra.mxu0 0.0
        %870 = vmatprep.subr.mxu0 0.0
        %871 = vmatpush1.msra.mxu0 0.0
        %872 = vmatprep.subr.mxu0 0.0
        %873 = vmatpush1.msra.mxu0 0.0
        %874 = vmatprep.subr.mxu0 0.0
        %875 = vmatpush1.msra.mxu0 0.0
        %876 = vmatprep.subr.mxu0 0.0
        %877 = vmatpush1.msra.mxu0 0.0
        %878 = vmatprep.subr.mxu0 0.0
        %879 = vmatpush1.msra.mxu0 0.0
        %880 = vmatprep.subr.mxu0 0.0
        %881 = vmatpush1.msra.mxu0 0.0
        %882 = vmatprep.subr.mxu0 0.0
        %883 = vmatpush1.msra.mxu0 0.0
        %884 = vmatprep.subr.mxu0 0.0
        %885 = vmatpush1.msra.mxu0 0.0
        %886 = vmatprep.subr.mxu0 0.0
        %887 = vmatpush1.msra.mxu0 0.0
        %888 = vmatprep.subr.mxu0 0.0
        %889 = vmatpush1.msra.mxu0 0.0
        %890 = vmatprep.subr.mxu0 0.0
        %891 = vmatpush1.msra.mxu0 0.0
        %892 = vmatprep.subr.mxu0 0.0
        %893 = vmatpush1.msra.mxu0 %v857
        %894 = vmatprep.subr.mxu0 0.0
        %895 = vmatpush2.msra.mxu0 0.0
        %896 = vmatprep.subr.mxu0 0.0
        %897 = vmatpush2.msra.mxu0 0.0
        %898 = vmatprep.subr.mxu0 0.0
        %899 = vmatpush2.msra.mxu0 0.0
        %900 = vmatprep.subr.mxu0 0.0
        %901 = vmatpush2.msra.mxu0 0.0
        %902 = vmatprep.subr.mxu0 0.0
        %903 = vmatpush2.msra.mxu0 0.0
        %904 = vmatprep.subr.mxu0 0.0
        %905 = vmatpush2.msra.mxu0 0.0
        %906 = vmatprep.subr.mxu0 0.0
        %907 = vmatpush2.msra.mxu0 0.0
        %908 = vmatprep.subr.mxu0 0.0
        %909 = vmatpush2.msra.mxu0 0.0
        %910 = vmatprep.subr.mxu0 0.0
        %911 = vmatpush2.msra.mxu0 0.0
        %912 = vmatprep.subr.mxu0 0.0
        %913 = vmatpush2.msra.mxu0 0.0
        %914 = vmatprep.subr.mxu0 0.0
        %915 = vmatpush2.msra.mxu0 0.0
        %916 = vmatprep.subr.mxu0 0.0
        %917 = vmatpush2.msra.mxu0 0.0
        %918 = vmatprep.subr.mxu0 0.0
        %919 = vmatpush2.msra.mxu0 0.0
        %920 = vmatprep.subr.mxu0 0.0
        %921 = vmatpush2.msra.mxu0 0.0
        %922 = vmatprep.subr.mxu0 0.0
        %923 = vmatpush2.msra.mxu0 0.0
        %924 = vmatprep.subr.mxu0 0.0
        %925 = vmatpush2.msra.mxu0 0.0
        %926 = vmatprep.mubr.f32.mxu0 0.0
        %927 = vmatmul.mubr.f32.gmra.mxu0 %v860
        %v928 = vpop.f32.mrf.mxu0
        %v929 = vadd.f32 0.0, %v928
        %v930 = vpop.f32.mrf.mxu0
        %931 = vdwg.mxu0
        %v932 = vmul.f32 %v929, %v854
        %934 = vrot.lane.b32.xlu0 %v932, 8
        %v935 = vpop.permute.xlu0 %934
        %vm937 = vcmask 130112
        %938 = vst.msk [vmem:[#allocation4] sm:$0xff] %vm937, %v935
        %v939 = vld [vmem:[#allocation2] sm:$0xff]
        %v940 = vld [vmem:[#allocation3] sm:$0xff]
        %941 = vrot.lane.b32.xlu0 %v597, 112
        %v942 = vpop.permute.xlu0 %941
        %944 = vrot.lane.b32.xlu0 %v939, 112
        %v945 = vpop.permute.xlu0 %944
        %v946 = vsel %vm602, %v942, 0
        %v948 = vsel %vm602, %v945, 0
        %950 = vmatprep.subr.mxu0 0.0
        %951 = vmatpush1.xpose.msra.mxu0 0.0
        %952 = vmatprep.subr.mxu0 0.0
        %953 = vmatpush1.xpose.msra.mxu0 0.0
        %954 = vmatprep.subr.mxu0 0.0
        %955 = vmatpush1.xpose.msra.mxu0 0.0
        %956 = vmatprep.subr.mxu0 0.0
        %957 = vmatpush1.xpose.msra.mxu0 0.0
        %958 = vmatprep.subr.mxu0 0.0
        %959 = vmatpush1.xpose.msra.mxu0 0.0
        %960 = vmatprep.subr.mxu0 0.0
        %961 = vmatpush1.xpose.msra.mxu0 0.0
        %962 = vmatprep.subr.mxu0 0.0
        %963 = vmatpush1.xpose.msra.mxu0 0.0
        %964 = vmatprep.subr.mxu0 0.0
        %965 = vmatpush1.xpose.msra.mxu0 0.0
        %966 = vmatprep.subr.mxu0 0.0
        %967 = vmatpush1.xpose.msra.mxu0 0.0
        %968 = vmatprep.subr.mxu0 0.0
        %969 = vmatpush1.xpose.msra.mxu0 0.0
        %970 = vmatprep.subr.mxu0 0.0
        %971 = vmatpush1.xpose.msra.mxu0 0.0
        %972 = vmatprep.subr.mxu0 0.0
        %973 = vmatpush1.xpose.msra.mxu0 0.0
        %974 = vmatprep.subr.mxu0 0.0
        %975 = vmatpush1.xpose.msra.mxu0 0.0
        %976 = vmatprep.subr.mxu0 0.0
        %977 = vmatpush1.xpose.msra.mxu0 0.0
        %978 = vmatprep.subr.mxu0 0.0
        %979 = vmatpush1.xpose.msra.mxu0 0.0
        %980 = vmatprep.subr.mxu0 0.0
        %981 = vmatpush1.xpose.msra.mxu0 %v948
        %982 = vmatprep.subr.mxu0 0.0
        %983 = vmatpush2.xpose.msra.mxu0 0.0
        %984 = vmatprep.subr.mxu0 0.0
        %985 = vmatpush2.xpose.msra.mxu0 0.0
        %986 = vmatprep.subr.mxu0 0.0
        %987 = vmatpush2.xpose.msra.mxu0 0.0
        %988 = vmatprep.subr.mxu0 0.0
        %989 = vmatpush2.xpose.msra.mxu0 0.0
        %990 = vmatprep.subr.mxu0 0.0
        %991 = vmatpush2.xpose.msra.mxu0 0.0
        %992 = vmatprep.subr.mxu0 0.0
        %993 = vmatpush2.xpose.msra.mxu0 0.0
        %994 = vmatprep.subr.mxu0 0.0
        %995 = vmatpush2.xpose.msra.mxu0 0.0
        %996 = vmatprep.subr.mxu0 0.0
        %997 = vmatpush2.xpose.msra.mxu0 0.0
        %998 = vmatprep.subr.mxu0 0.0
        %999 = vmatpush2.xpose.msra.mxu0 0.0
        %1000 = vmatprep.subr.mxu0 0.0
        %1001 = vmatpush2.xpose.msra.mxu0 0.0
        %1002 = vmatprep.subr.mxu0 0.0
        %1003 = vmatpush2.xpose.msra.mxu0 0.0
        %1004 = vmatprep.subr.mxu0 0.0
        %1005 = vmatpush2.xpose.msra.mxu0 0.0
        %1006 = vmatprep.subr.mxu0 0.0
        %1007 = vmatpush2.xpose.msra.mxu0 0.0
        %1008 = vmatprep.subr.mxu0 0.0
        %1009 = vmatpush2.xpose.msra.mxu0 0.0
        %1010 = vmatprep.subr.mxu0 0.0
        %1011 = vmatpush2.xpose.msra.mxu0 0.0
        %1012 = vmatprep.subr.mxu0 0.0
        %1013 = vmatpush2.xpose.msra.mxu0 0.0
        %1014 = vmatprep.mubr.f32.mxu0 0.0
        %1015 = vmatmul.mubr.f32.gmra.mxu0 %v946
        %v1016 = vpop.f32.mrf.mxu0
        %v1017 = vadd.f32 0.0, %v1016
        %v1018 = vpop.f32.mrf.mxu0
        %1019 = vdwg.mxu0
        %v1020 = vsel %vm602, %v1017, -inf
        %1021 = vmax.xlane.f32.xlu0 %v1020
        %v1022 = vpop.xlane.xlu0 %1021
        %v1023 = vsub.f32 %v1017, %v1022
        %v1024 = vmul.f32 %v1023, 1.442695
        %v1025 = vpow.pop %v1024
        %v1026 = vsel %vm602, %v1025, 0.0
        %1027 = vadd.xlane.f32.xlu0 %v1026
        %v1028 = vpop.xlane.xlu0 %1027
        %v1029 = vrcp.pop %v1028
        %1031 = vrot.lane.b32.xlu0 %v940, 112
        %v1032 = vpop.permute.xlu0 %1031
        %v1035 = vsel %vm602, %v1025, 0
        %1037 = vmatprep.subr.mxu0 0.0
        %1038 = vmatpush1.msra.mxu0 0.0
        %1039 = vmatprep.subr.mxu0 0.0
        %1040 = vmatpush1.msra.mxu0 0.0
        %1041 = vmatprep.subr.mxu0 0.0
        %1042 = vmatpush1.msra.mxu0 0.0
        %1043 = vmatprep.subr.mxu0 0.0
        %1044 = vmatpush1.msra.mxu0 0.0
        %1045 = vmatprep.subr.mxu0 0.0
        %1046 = vmatpush1.msra.mxu0 0.0
        %1047 = vmatprep.subr.mxu0 0.0
        %1048 = vmatpush1.msra.mxu0 0.0
        %1049 = vmatprep.subr.mxu0 0.0
        %1050 = vmatpush1.msra.mxu0 0.0
        %1051 = vmatprep.subr.mxu0 0.0
        %1052 = vmatpush1.msra.mxu0 0.0
        %1053 = vmatprep.subr.mxu0 0.0
        %1054 = vmatpush1.msra.mxu0 0.0
        %1055 = vmatprep.subr.mxu0 0.0
        %1056 = vmatpush1.msra.mxu0 0.0
        %1057 = vmatprep.subr.mxu0 0.0
        %1058 = vmatpush1.msra.mxu0 0.0
        %1059 = vmatprep.subr.mxu0 0.0
        %1060 = vmatpush1.msra.mxu0 0.0
        %1061 = vmatprep.subr.mxu0 0.0
        %1062 = vmatpush1.msra.mxu0 0.0
        %1063 = vmatprep.subr.mxu0 0.0
        %1064 = vmatpush1.msra.mxu0 0.0
        %1065 = vmatprep.subr.mxu0 0.0
        %1066 = vmatpush1.msra.mxu0 0.0
        %1067 = vmatprep.subr.mxu0 0.0
        %1068 = vmatpush1.msra.mxu0 %v1032
        %1069 = vmatprep.subr.mxu0 0.0
        %1070 = vmatpush2.msra.mxu0 0.0
        %1071 = vmatprep.subr.mxu0 0.0
        %1072 = vmatpush2.msra.mxu0 0.0
        %1073 = vmatprep.subr.mxu0 0.0
        %1074 = vmatpush2.msra.mxu0 0.0
        %1075 = vmatprep.subr.mxu0 0.0
        %1076 = vmatpush2.msra.mxu0 0.0
        %1077 = vmatprep.subr.mxu0 0.0
        %1078 = vmatpush2.msra.mxu0 0.0
        %1079 = vmatprep.subr.mxu0 0.0
        %1080 = vmatpush2.msra.mxu0 0.0
        %1081 = vmatprep.subr.mxu0 0.0
        %1082 = vmatpush2.msra.mxu0 0.0
        %1083 = vmatprep.subr.mxu0 0.0
        %1084 = vmatpush2.msra.mxu0 0.0
        %1085 = vmatprep.subr.mxu0 0.0
        %1086 = vmatpush2.msra.mxu0 0.0
        %1087 = vmatprep.subr.mxu0 0.0
        %1088 = vmatpush2.msra.mxu0 0.0
        %1089 = vmatprep.subr.mxu0 0.0
        %1090 = vmatpush2.msra.mxu0 0.0
        %1091 = vmatprep.subr.mxu0 0.0
        %1092 = vmatpush2.msra.mxu0 0.0
        %1093 = vmatprep.subr.mxu0 0.0
        %1094 = vmatpush2.msra.mxu0 0.0
        %1095 = vmatprep.subr.mxu0 0.0
        %1096 = vmatpush2.msra.mxu0 0.0
        %1097 = vmatprep.subr.mxu0 0.0
        %1098 = vmatpush2.msra.mxu0 0.0
        %1099 = vmatprep.subr.mxu0 0.0
        %1100 = vmatpush2.msra.mxu0 0.0
        %1101 = vmatprep.mubr.f32.mxu0 0.0
        %1102 = vmatmul.mubr.f32.gmra.mxu0 %v1035
        %v1103 = vpop.f32.mrf.mxu0
        %v1104 = vadd.f32 0.0, %v1103
        %v1105 = vpop.f32.mrf.mxu0
        %1106 = vdwg.mxu0
        %v1107 = vmul.f32 %v1104, %v1029
        %1109 = vrot.lane.b32.xlu0 %v1107, 16
        %v1110 = vpop.permute.xlu0 %1109
        %vm1112 = vcmask 195712
        %1113 = vst.msk [vmem:[#allocation4] sm:$0xff] %vm1112, %v1110
        %v1114 = vld [vmem:[#allocation2] sm:$0xff]
        %v1115 = vld [vmem:[#allocation3] sm:$0xff]
        %1116 = vrot.lane.b32.xlu0 %v597, 104
        %v1117 = vpop.permute.xlu0 %1116
        %1119 = vrot.lane.b32.xlu0 %v1114, 104
        %v1120 = vpop.permute.xlu0 %1119
        %v1121 = vsel %vm602, %v1117, 0
        %v1123 = vsel %vm602, %v1120, 0
        %1125 = vmatprep.subr.mxu0 0.0
        %1126 = vmatpush1.xpose.msra.mxu0 0.0
        %1127 = vmatprep.subr.mxu0 0.0
        %1128 = vmatpush1.xpose.msra.mxu0 0.0
        %1129 = vmatprep.subr.mxu0 0.0
        %1130 = vmatpush1.xpose.msra.mxu0 0.0
        %1131 = vmatprep.subr.mxu0 0.0
        %1132 = vmatpush1.xpose.msra.mxu0 0.0
        %1133 = vmatprep.subr.mxu0 0.0
        %1134 = vmatpush1.xpose.msra.mxu0 0.0
        %1135 = vmatprep.subr.mxu0 0.0
        %1136 = vmatpush1.xpose.msra.mxu0 0.0
        %1137 = vmatprep.subr.mxu0 0.0
        %1138 = vmatpush1.xpose.msra.mxu0 0.0
        %1139 = vmatprep.subr.mxu0 0.0
        %1140 = vmatpush1.xpose.msra.mxu0 0.0
        %1141 = vmatprep.subr.mxu0 0.0
        %1142 = vmatpush1.xpose.msra.mxu0 0.0
        %1143 = vmatprep.subr.mxu0 0.0
        %1144 = vmatpush1.xpose.msra.mxu0 0.0
        %1145 = vmatprep.subr.mxu0 0.0
        %1146 = vmatpush1.xpose.msra.mxu0 0.0
        %1147 = vmatprep.subr.mxu0 0.0
        %1148 = vmatpush1.xpose.msra.mxu0 0.0
        %1149 = vmatprep.subr.mxu0 0.0
        %1150 = vmatpush1.xpose.msra.mxu0 0.0
        %1151 = vmatprep.subr.mxu0 0.0
        %1152 = vmatpush1.xpose.msra.mxu0 0.0
        %1153 = vmatprep.subr.mxu0 0.0
        %1154 = vmatpush1.xpose.msra.mxu0 0.0
        %1155 = vmatprep.subr.mxu0 0.0
        %1156 = vmatpush1.xpose.msra.mxu0 %v1123
        %1157 = vmatprep.subr.mxu0 0.0
        %1158 = vmatpush2.xpose.msra.mxu0 0.0
        %1159 = vmatprep.subr.mxu0 0.0
        %1160 = vmatpush2.xpose.msra.mxu0 0.0
        %1161 = vmatprep.subr.mxu0 0.0
        %1162 = vmatpush2.xpose.msra.mxu0 0.0
        %1163 = vmatprep.subr.mxu0 0.0
        %1164 = vmatpush2.xpose.msra.mxu0 0.0
        %1165 = vmatprep.subr.mxu0 0.0
        %1166 = vmatpush2.xpose.msra.mxu0 0.0
        %1167 = vmatprep.subr.mxu0 0.0
        %1168 = vmatpush2.xpose.msra.mxu0 0.0
        %1169 = vmatprep.subr.mxu0 0.0
        %1170 = vmatpush2.xpose.msra.mxu0 0.0
        %1171 = vmatprep.subr.mxu0 0.0
        %1172 = vmatpush2.xpose.msra.mxu0 0.0
        %1173 = vmatprep.subr.mxu0 0.0
        %1174 = vmatpush2.xpose.msra.mxu0 0.0
        %1175 = vmatprep.subr.mxu0 0.0
        %1176 = vmatpush2.xpose.msra.mxu0 0.0
        %1177 = vmatprep.subr.mxu0 0.0
        %1178 = vmatpush2.xpose.msra.mxu0 0.0
        %1179 = vmatprep.subr.mxu0 0.0
        %1180 = vmatpush2.xpose.msra.mxu0 0.0
        %1181 = vmatprep.subr.mxu0 0.0
        %1182 = vmatpush2.xpose.msra.mxu0 0.0
        %1183 = vmatprep.subr.mxu0 0.0
        %1184 = vmatpush2.xpose.msra.mxu0 0.0
        %1185 = vmatprep.subr.mxu0 0.0
        %1186 = vmatpush2.xpose.msra.mxu0 0.0
        %1187 = vmatprep.subr.mxu0 0.0
        %1188 = vmatpush2.xpose.msra.mxu0 0.0
        %1189 = vmatprep.mubr.f32.mxu0 0.0
        %1190 = vmatmul.mubr.f32.gmra.mxu0 %v1121
        %v1191 = vpop.f32.mrf.mxu0
        %v1192 = vadd.f32 0.0, %v1191
        %v1193 = vpop.f32.mrf.mxu0
        %1194 = vdwg.mxu0
        %v1195 = vsel %vm602, %v1192, -inf
        %1196 = vmax.xlane.f32.xlu0 %v1195
        %v1197 = vpop.xlane.xlu0 %1196
        %v1198 = vsub.f32 %v1192, %v1197
        %v1199 = vmul.f32 %v1198, 1.442695
        %v1200 = vpow.pop %v1199
        %v1201 = vsel %vm602, %v1200, 0.0
        %1202 = vadd.xlane.f32.xlu0 %v1201
        %v1203 = vpop.xlane.xlu0 %1202
        %v1204 = vrcp.pop %v1203
        %1206 = vrot.lane.b32.xlu0 %v1115, 104
        %v1207 = vpop.permute.xlu0 %1206
        %v1210 = vsel %vm602, %v1200, 0
        %1212 = vmatprep.subr.mxu0 0.0
        %1213 = vmatpush1.msra.mxu0 0.0
        %1214 = vmatprep.subr.mxu0 0.0
        %1215 = vmatpush1.msra.mxu0 0.0
        %1216 = vmatprep.subr.mxu0 0.0
        %1217 = vmatpush1.msra.mxu0 0.0
        %1218 = vmatprep.subr.mxu0 0.0
        %1219 = vmatpush1.msra.mxu0 0.0
        %1220 = vmatprep.subr.mxu0 0.0
        %1221 = vmatpush1.msra.mxu0 0.0
        %1222 = vmatprep.subr.mxu0 0.0
        %1223 = vmatpush1.msra.mxu0 0.0
        %1224 = vmatprep.subr.mxu0 0.0
        %1225 = vmatpush1.msra.mxu0 0.0
        %1226 = vmatprep.subr.mxu0 0.0
        %1227 = vmatpush1.msra.mxu0 0.0
        %1228 = vmatprep.subr.mxu0 0.0
        %1229 = vmatpush1.msra.mxu0 0.0
        %1230 = vmatprep.subr.mxu0 0.0
        %1231 = vmatpush1.msra.mxu0 0.0
        %1232 = vmatprep.subr.mxu0 0.0
        %1233 = vmatpush1.msra.mxu0 0.0
        %1234 = vmatprep.subr.mxu0 0.0
        %1235 = vmatpush1.msra.mxu0 0.0
        %1236 = vmatprep.subr.mxu0 0.0
        %1237 = vmatpush1.msra.mxu0 0.0
        %1238 = vmatprep.subr.mxu0 0.0
        %1239 = vmatpush1.msra.mxu0 0.0
        %1240 = vmatprep.subr.mxu0 0.0
        %1241 = vmatpush1.msra.mxu0 0.0
        %1242 = vmatprep.subr.mxu0 0.0
        %1243 = vmatpush1.msra.mxu0 %v1207
        %1244 = vmatprep.subr.mxu0 0.0
        %1245 = vmatpush2.msra.mxu0 0.0
        %1246 = vmatprep.subr.mxu0 0.0
        %1247 = vmatpush2.msra.mxu0 0.0
        %1248 = vmatprep.subr.mxu0 0.0
        %1249 = vmatpush2.msra.mxu0 0.0
        %1250 = vmatprep.subr.mxu0 0.0
        %1251 = vmatpush2.msra.mxu0 0.0
        %1252 = vmatprep.subr.mxu0 0.0
        %1253 = vmatpush2.msra.mxu0 0.0
        %1254 = vmatprep.subr.mxu0 0.0
        %1255 = vmatpush2.msra.mxu0 0.0
        %1256 = vmatprep.subr.mxu0 0.0
        %1257 = vmatpush2.msra.mxu0 0.0
        %1258 = vmatprep.subr.mxu0 0.0
        %1259 = vmatpush2.msra.mxu0 0.0
        %1260 = vmatprep.subr.mxu0 0.0
        %1261 = vmatpush2.msra.mxu0 0.0
        %1262 = vmatprep.subr.mxu0 0.0
        %1263 = vmatpush2.msra.mxu0 0.0
        %1264 = vmatprep.subr.mxu0 0.0
        %1265 = vmatpush2.msra.mxu0 0.0
        %1266 = vmatprep.subr.mxu0 0.0
        %1267 = vmatpush2.msra.mxu0 0.0
        %1268 = vmatprep.subr.mxu0 0.0
        %1269 = vmatpush2.msra.mxu0 0.0
        %1270 = vmatprep.subr.mxu0 0.0
        %1271 = vmatpush2.msra.mxu0 0.0
        %1272 = vmatprep.subr.mxu0 0.0
        %1273 = vmatpush2.msra.mxu0 0.0
        %1274 = vmatprep.subr.mxu0 0.0
        %1275 = vmatpush2.msra.mxu0 0.0
        %1276 = vmatprep.mubr.f32.mxu0 0.0
        %1277 = vmatmul.mubr.f32.gmra.mxu0 %v1210
        %v1278 = vpop.f32.mrf.mxu0
        %v1279 = vadd.f32 0.0, %v1278
        %v1280 = vpop.f32.mrf.mxu0
        %1281 = vdwg.mxu0
        %v1282 = vmul.f32 %v1279, %v1204
        %1284 = vrot.lane.b32.xlu0 %v1282, 24
        %v1285 = vpop.permute.xlu0 %1284
        %vm1287 = vcmask 261312
        %1288 = vst.msk [vmem:[#allocation4] sm:$0xff] %vm1287, %v1285
        %v1289 = vld [vmem:[#allocation4] sm:$0xff]
        %v1290 = vld [vmem:[#allocation13] sm:$0xff]
        %v1291 = vld [vmem:[#allocation13 + $0x8] sm:$0xff]
        %v1292 = vld [vmem:[#allocation13 + $0x10] sm:$0xff]
        %v1293 = vld [vmem:[#allocation13 + $0x18] sm:$0xff]
        %v1294 = vld [vmem:[%s7] sm:$0x1]
        %v1296 = vlaneseq
        %v1297 = vshrl.u32 %v1296, 7
        %v1298 = vsub.s32 0, %v1297
        %v1299 = vrot.slane %v1294, %v1298
        %v1302 = vsel %vm526, %v1289, 0
        %1304 = vmatprep.subr.mxu0 0.0
        %1305 = vmatpush1.msra.mxu0 0.0
        %1306 = vmatprep.subr.mxu0 0.0
        %1307 = vmatpush1.msra.mxu0 0.0
        %1308 = vmatprep.subr.mxu0 0.0
        %1309 = vmatpush1.msra.mxu0 0.0
        %1310 = vmatprep.subr.mxu0 0.0
        %1311 = vmatpush1.msra.mxu0 0.0
        %1312 = vmatprep.subr.mxu0 0.0
        %1313 = vmatpush1.msra.mxu0 0.0
        %1314 = vmatprep.subr.mxu0 0.0
        %1315 = vmatpush1.msra.mxu0 0.0
        %1316 = vmatprep.subr.mxu0 0.0
        %1317 = vmatpush1.msra.mxu0 0.0
        %1318 = vmatprep.subr.mxu0 0.0
        %1319 = vmatpush1.msra.mxu0 0.0
        %1320 = vmatprep.subr.mxu0 0.0
        %1321 = vmatpush1.msra.mxu0 0.0
        %1322 = vmatprep.subr.mxu0 0.0
        %1323 = vmatpush1.msra.mxu0 0.0
        %1324 = vmatprep.subr.mxu0 0.0
        %1325 = vmatpush1.msra.mxu0 0.0
        %1326 = vmatprep.subr.mxu0 0.0
        %1327 = vmatpush1.msra.mxu0 0.0
        %1328 = vmatprep.subr.mxu0 0.0
        %1329 = vmatpush1.msra.mxu0 %v1293
        %1330 = vmatprep.subr.mxu0 0.0
        %1331 = vmatpush1.msra.mxu0 %v1292
        %1332 = vmatprep.subr.mxu0 0.0
        %1333 = vmatpush1.msra.mxu0 %v1291
        %1334 = vmatprep.subr.mxu0 0.0
        %1335 = vmatpush1.msra.mxu0 %v1290
        %1336 = vmatprep.subr.mxu0 0.0
        %1337 = vmatpush2.msra.mxu0 0.0
        %1338 = vmatprep.subr.mxu0 0.0
        %1339 = vmatpush2.msra.mxu0 0.0
        %1340 = vmatprep.subr.mxu0 0.0
        %1341 = vmatpush2.msra.mxu0 0.0
        %1342 = vmatprep.subr.mxu0 0.0
        %1343 = vmatpush2.msra.mxu0 0.0
        %1344 = vmatprep.subr.mxu0 0.0
        %1345 = vmatpush2.msra.mxu0 0.0
        %1346 = vmatprep.subr.mxu0 0.0
        %1347 = vmatpush2.msra.mxu0 0.0
        %1348 = vmatprep.subr.mxu0 0.0
        %1349 = vmatpush2.msra.mxu0 0.0
        %1350 = vmatprep.subr.mxu0 0.0
        %1351 = vmatpush2.msra.mxu0 0.0
        %1352 = vmatprep.subr.mxu0 0.0
        %1353 = vmatpush2.msra.mxu0 0.0
        %1354 = vmatprep.subr.mxu0 0.0
        %1355 = vmatpush2.msra.mxu0 0.0
        %1356 = vmatprep.subr.mxu0 0.0
        %1357 = vmatpush2.msra.mxu0 0.0
        %1358 = vmatprep.subr.mxu0 0.0
        %1359 = vmatpush2.msra.mxu0 0.0
        %1360 = vmatprep.subr.mxu0 0.0
        %1361 = vmatpush2.msra.mxu0 0.0
        %1362 = vmatprep.subr.mxu0 0.0
        %1363 = vmatpush2.msra.mxu0 0.0
        %1364 = vmatprep.subr.mxu0 0.0
        %1365 = vmatpush2.msra.mxu0 0.0
        %1366 = vmatprep.subr.mxu0 0.0
        %1367 = vmatpush2.msra.mxu0 0.0
        %1368 = vmatprep.mubr.f32.mxu0 0.0
        %1369 = vmatmul.mubr.f32.gmra.mxu0 %v1302
        %v1370 = vpop.f32.mrf.mxu0
        %v1371 = vadd.f32 %v1299, %v1370
        %v1372 = vpop.f32.mrf.mxu0
        %1373 = vdwg.mxu0
        %1374 = vst.msk [vmem:[%s417] sm:$0xff] %vm526, %v1371
        %s1375 = sand.u32 %s231, 1
        %s1376 = scalar_lea.sflag [#allocation7], %s1375
        %s1377 = sand.u32 %s231, 1
        %s1378 = smul.addr %s1377, 8
        %s1379 = scalar_lea.vmem [#allocation14], %s1378
        // Predicated region
        $region77: #{tpu_custom_call.1} parent=51 // pred_check
          %p1380 = pneg %p241
        $region78: #{tpu_custom_call.1} parent=51 // pred_check_branch
          %1382 = sbr.rel (%p1380) target = $region80
        $region79: #{tpu_custom_call.1} parent=51 // pred_region
          %s1384 = ssub.s32 128, 128
          %1385 = vsyncadd %s1376, %s1384
          %s1386 = sadd.s32 %s34, %s33
          %s1387 = smul.addr %s1386, 128
          %s1388 = scalar_lea.hbm %s8, %s1387
          %s1390 = sshll.u32 %s1379, 4
          %s1391 = int_to_ptr.vmem [resolvable:$true] %s1390
          %1393 = dma.vmem_to_hbm [thread:$0]  %s1391, 128, %s1388, %s1376
        $region80: #{tpu_custom_call.1} parent=51 // pred_fallthru
          _
      $region52: #{tpu_custom_call.1} parent=5 // pred_fallthru
        _
      %p1394 = scmp.le.s32.totalorder 2, %s24
      // Predicated region
      $region81: #{tpu_custom_call.1} parent=5 // pred_check
        %p1395 = pneg %p1394
      $region82: #{tpu_custom_call.1} parent=5 // pred_check_branch
        %1397 = sbr.rel (%p1395) target = $region84
      $region83: #{tpu_custom_call.1} parent=5 // pred_region
        %s1398 = ssub.s32 %s24, 2
        // Predicated region
        $region85: #{tpu_custom_call.1} parent=83 // pred_check
          %p1399 = pneg %p247
        $region86: #{tpu_custom_call.1} parent=83 // pred_check_branch
          %1401 = sbr.rel (%p1399) target = $region88
        $region87: #{tpu_custom_call.1} parent=83 // pred_region
          %s1402 = sand.u32 %s232, 1
          %s1403 = scalar_lea.sflag [#allocation7], %s1402
          %s1404 = sand.u32 %s232, 1
          %s1405 = smul.addr %s1404, 8
          %s1406 = scalar_lea.vmem [#allocation14], %s1405
          %1407 = dma.done %s1403, 128
        $region88: #{tpu_custom_call.1} parent=83 // pred_fallthru
          _
      $region84: #{tpu_custom_call.1} parent=5 // pred_fallthru
        _
    $region6: #{tpu_custom_call.1} parent=1 // loop_footer
      %s28 = sadd.s32 1, %s24
    $region7: #{tpu_custom_call.1} parent=1 // loop_footer_branch
      %23 = sbr.rel target = $region3
    $region8: #{tpu_custom_call.1} parent=1 // loop_exit
      _
    %1408 = vsyncpa [#allocation6], 1
    %s1409 = scalar_lea.sflag [#allocation6], 1
    %1410 = vsyncpa %s1409, 1
    %1411 = vsyncpa [#allocation9], 1
    %s1412 = scalar_lea.sflag [#allocation9], 1
    %1413 = vsyncpa %s1412, 1
    %1414 = vsyncpa [#allocation12], 1
    %1415 = vsyncpa [#allocation7], 1
    %s1416 = scalar_lea.sflag [#allocation7], 1
    %1417 = vsyncpa %s1416, 1

</llo_original>
